<compile_context>
chip_gen: v7x
topology: tpu7x:2x2x1
jax: 0.10.0
libtpu: 0.0.40
codegen_flags: <defaults>
</compile_context>

<pallas_src>
import jax
import jax.numpy as jnp
from jax import lax
from jax.experimental import pallas as pl
from jax.experimental.pallas import tpu as pltpu  # noqa: F401 (kept for TPU-specific tuning hooks)

# ---------------- tiny-BERT config (synthetic, deterministic init) ----------------
B, S, H = 2, 8, 32          # batch, seq len, hidden
NH, HD = 2, 16              # num heads, head dim
F = 64                      # FFN intermediate size
L = 2                       # number of encoder layers
V = 128                     # vocab size
MAXPOS = 16                 # max position embeddings
EPS = 1e-12                 # BERT LayerNorm eps
SCALE = 1.0 / (HD ** 0.5)
BS = B * S


def _layernorm_fused(x, g, b):
    # single-pass variance: E[x^2] - mu^2  (one cross-lane reduction fewer)
    mu = jnp.mean(x, axis=-1, keepdims=True)
    ms = jnp.mean(x * x, axis=-1, keepdims=True)
    return (x - mu) * lax.rsqrt(ms - mu * mu + EPS) * g + b


def _layernorm_ref(x, g, b):
    mu = jnp.mean(x, axis=-1, keepdims=True)
    var = jnp.mean((x - mu) ** 2, axis=-1, keepdims=True)
    return (x - mu) * lax.rsqrt(var + EPS) * g + b


# ------------------------------- Pallas kernel -------------------------------
def encoder_kernel(x_ref, mask_ref, embln_ref, attnw_ref, ffnw_ref, vec_ref, o_ref):
    x = x_ref[...]                         # (BS, H) summed embeddings (pre-LN)
    mask = mask_ref[...]                   # (BS, BS) additive mask (block-diag + padding)

    embln = embln_ref[...]                 # (2, H)
    x = _layernorm_fused(x, embln[0:1, :], embln[1:2, :])

    for l in range(L):                     # static unrolled layer loop
        w_attn = attnw_ref[l]              # (H, 4H): [Wq | Wk | Wv | Wo]
        w_ffn = ffnw_ref[l]                # (2H, F): rows [0:H]=W1, rows [H:2H]=W2^T
        vec = vec_ref[l]                   # (8, 128) packed bias / LayerNorm vectors

        b_qkv = vec[0:1, 0:3 * H]          # (1, 3H)
        b_o   = vec[1:2, 0:H]
        ln1_g = vec[2:3, 0:H]
        ln1_b = vec[3:4, 0:H]
        b_1   = vec[4:5, 0:F]
        b_2   = vec[5:6, 0:H]
        ln2_g = vec[6:7, 0:H]
        ln2_b = vec[7:8, 0:H]

        # ---- fused QKV projection: one (BS,H) x (H,3H) matmul ----
        qkv = jnp.dot(x, w_attn[:, 0:3 * H],
                      preferred_element_type=jnp.float32) + b_qkv       # (BS, 3H)
        q = qkv[:, 0:H]
        k = qkv[:, H:2 * H]
        v = qkv[:, 2 * H:3 * H]
        w_o = w_attn[:, 3 * H:4 * H]                                     # (H, H)

        # ---- multi-head attention over the full (BS, BS) score matrix ----
        # the additive mask blocks cross-batch attention and padded keys
        ctx_heads = []
        for h in range(NH):
            sl = slice(h * HD, (h + 1) * HD)
            qh, kh, vh = q[:, sl], k[:, sl], v[:, sl]                    # (BS, HD)
            s = lax.dot_general(qh, kh, (((1,), (1,)), ((), ())),
                                preferred_element_type=jnp.float32) * SCALE + mask
            s = s - jnp.max(s, axis=-1, keepdims=True)
            p = jnp.exp(s)
            p = p * pl.reciprocal(jnp.sum(p, axis=-1, keepdims=True), approx=True)
            ctx_heads.append(jnp.dot(p, vh, preferred_element_type=jnp.float32))
        ctx = jnp.concatenate(ctx_heads, axis=-1)                        # (BS, H)

        # single output projection over the concatenated heads
        attn = jnp.dot(ctx, w_o, preferred_element_type=jnp.float32) + b_o
        x = _layernorm_fused(x + attn, ln1_g, ln1_b)

        # ---- feed-forward ----
        # TODO(synk): BERT uses exact erf-GELU; tanh-approximate GELU used here (EUP-friendly).
        h1 = jnp.dot(x, w_ffn[0:H, :], preferred_element_type=jnp.float32) + b_1
        h1 = jax.nn.gelu(h1, approximate=True)
        f = lax.dot_general(h1, w_ffn[H:2 * H, :], (((1,), (1,)), ((), ())),
                            preferred_element_type=jnp.float32) + b_2    # h1 @ W2
        x = _layernorm_fused(x + f, ln2_g, ln2_b)

    # sentence embedding: mean over sequence positions, per batch element
    # (matches last_hidden_state.mean(dim=1) of the original module — unmasked mean)
    rows = [jnp.sum(x[b * S:(b + 1) * S, :], axis=0, keepdims=True) for b in range(B)]
    o_ref[...] = jnp.concatenate(rows, axis=0) * (1.0 / S)               # (B, H) lane-dense


# ------------------------------- wrapper -------------------------------
def sentence_transformer_pallas(input_ids, attention_mask, p):
    # Embedding lookup (glue; gather has no clean tiled BlockSpec form at this size)
    x = (p['word_emb'][input_ids]
         + p['pos_emb'][:S][None, :, :]
         + p['type_emb'][0][None, None, :]).astype(jnp.float32)          # (B, S, H)
    x2 = x.reshape(BS, H)

    # block-diagonal additive attention mask over the flattened (B*S) token axis
    batch_ids = jnp.repeat(jnp.arange(B), S)                             # (BS,)
    same_batch = batch_ids[:, None] == batch_ids[None, :]
    key_valid = attention_mask.reshape(-1) > 0
    mask_add = jnp.where(same_batch & key_valid[None, :], 0.0, -10000.0).astype(jnp.float32)

    # --- pack parameters into a few contiguous slabs ---
    emb_ln = jnp.concatenate([p['emb_ln_g'], p['emb_ln_b']], axis=0)     # (2, H)
    attn_w = jnp.concatenate([p['wq'], p['wk'], p['wv'], p['wo']], axis=-1)   # (L, H, 4H)
    ffn_w = jnp.concatenate([p['w1'], jnp.swapaxes(p['w2'], 1, 2)], axis=1)   # (L, 2H, F)

    def pad128(v):                                                       # (L, 1, w) -> (L, 1, 128)
        return jnp.pad(v, ((0, 0), (0, 0), (0, 128 - v.shape[-1])))

    vec = jnp.concatenate([
        pad128(jnp.concatenate([p['bq'], p['bk'], p['bv']], axis=-1)),   # row 0: bqkv (3H)
        pad128(p['bo']),                                                 # row 1
        pad128(p['ln1_g']),                                              # row 2
        pad128(p['ln1_b']),                                              # row 3
        pad128(p['b1']),                                                 # row 4 (F lanes)
        pad128(p['b2']),                                                 # row 5
        pad128(p['ln2_g']),                                              # row 6
        pad128(p['ln2_b']),                                              # row 7
    ], axis=1)                                                           # (L, 8, 128)

    # Single gridless invocation: whole arrays resident in VMEM, no per-step overhead.
    pooled = pl.pallas_call(
        encoder_kernel,
        out_shape=jax.ShapeDtypeStruct((B, H), jnp.float32),
    )(x2, mask_add, emb_ln, attn_w, ffn_w, vec)
    return pooled                                                        # (B, H)


# ------------------------------- params + reference -------------------------------
def init_params(key):
    ks = jax.random.split(key, 12)
    std = 0.02
    n = lambda k, s: (std * jax.random.normal(k, s, jnp.float32))
    p = {
        'word_emb': n(ks[0], (V, H)),
        'pos_emb':  n(ks[1], (MAXPOS, H)),
        'type_emb': n(ks[2], (2, H)),
        'emb_ln_g': jnp.ones((1, H), jnp.float32),
        'emb_ln_b': jnp.zeros((1, H), jnp.float32),
        'wq': n(ks[3], (L, H, H)), 'bq': n(ks[4], (L, 1, H)),
        'wk': n(ks[5], (L, H, H)), 'bk': jnp.zeros((L, 1, H), jnp.float32),
        'wv': n(ks[6], (L, H, H)), 'bv': jnp.zeros((L, 1, H), jnp.float32),
        'wo': n(ks[7], (L, H, H)), 'bo': jnp.zeros((L, 1, H), jnp.float32),
        'ln1_g': jnp.ones((L, 1, H), jnp.float32), 'ln1_b': jnp.zeros((L, 1, H), jnp.float32),
        'w1': n(ks[8], (L, H, F)), 'b1': n(ks[9], (L, 1, F)),
        'w2': n(ks[10], (L, F, H)), 'b2': n(ks[11], (L, 1, H)),
        'ln2_g': jnp.ones((L, 1, H), jnp.float32), 'ln2_b': jnp.zeros((L, 1, H), jnp.float32),
    }
    return p


def ref_forward(input_ids, attention_mask, p):
    x = (p['word_emb'][input_ids] + p['pos_emb'][:S][None] + p['type_emb'][0][None, None])
    x = _layernorm_ref(x, p['emb_ln_g'], p['emb_ln_b'])
    maskadd = ((1.0 - attention_mask.astype(jnp.float32)) * -10000.0)[:, None, None, :]
    for l in range(L):
        q = x @ p['wq'][l] + p['bq'][l]
        k = x @ p['wk'][l] + p['bk'][l]
        v = x @ p['wv'][l] + p['bv'][l]
        qh = q.reshape(B, S, NH, HD).transpose(0, 2, 1, 3)
        kh = k.reshape(B, S, NH, HD).transpose(0, 2, 1, 3)
        vh = v.reshape(B, S, NH, HD).transpose(0, 2, 1, 3)
        s = jnp.einsum('bhqd,bhkd->bhqk', qh, kh) * SCALE + maskadd
        pr = jax.nn.softmax(s, axis=-1)
        ctx = jnp.einsum('bhqk,bhkd->bhqd', pr, vh).transpose(0, 2, 1, 3).reshape(B, S, H)
        attn = ctx @ p['wo'][l] + p['bo'][l]
        x = _layernorm_ref(x + attn, p['ln1_g'][l], p['ln1_b'][l])
        h1 = jax.nn.gelu(x @ p['w1'][l] + p['b1'][l], approximate=True)
        f = h1 @ p['w2'][l] + p['b2'][l]
        x = _layernorm_ref(x + f, p['ln2_g'][l], p['ln2_b'][l])
    return x.mean(axis=1)


if __name__ == "__main__":
    key = jax.random.PRNGKey(0)
    kp, kid = jax.random.split(key)
    params = init_params(kp)

    input_ids = jax.random.randint(kid, (B, S), 0, V)
    attention_mask = jnp.ones((B, S), jnp.int32).at[1, 6:].set(0)

    out = sentence_transformer_pallas(input_ids, attention_mask, params)
    out = jax.block_until_ready(out)

    ref = ref_forward(input_ids, attention_mask, params)
    assert out.shape == (B, H), out.shape
    assert bool(jnp.all(jnp.isfinite(out)))
    assert bool(jnp.allclose(out, ref, atol=2e-2, rtol=2e-2))
    print("KERNEL_OK")
</pallas_src>

<mosaic_0001>
module attributes {stable_mosaic.version = 11 : i64} {
  func.func @encoder_kernel(%arg0: memref<16x32xf32, #tpu.memory_space<vmem>>, %arg1: memref<16x16xf32, #tpu.memory_space<vmem>>, %arg2: memref<2x32xf32, #tpu.memory_space<vmem>>, %arg3: memref<2x32x128xf32, #tpu.memory_space<vmem>>, %arg4: memref<2x64x64xf32, #tpu.memory_space<vmem>>, %arg5: memref<2x8x128xf32, #tpu.memory_space<vmem>>, %arg6: memref<2x32xf32, #tpu.memory_space<vmem>>) attributes {dimension_semantics = [], scalar_prefetch = 0 : i64, scratch_operands = 0 : i64, tpu.core_type = #tpu.core_type<tc>} {
    %c0 = arith.constant 0 : index
    %c0_0 = arith.constant 0 : index
    %0 = vector.load %arg0[%c0, %c0_0] : memref<16x32xf32, #tpu.memory_space<vmem>>, vector<16x32xf32>
    %c0_1 = arith.constant 0 : index
    %c0_2 = arith.constant 0 : index
    %1 = vector.load %arg1[%c0_1, %c0_2] : memref<16x16xf32, #tpu.memory_space<vmem>>, vector<16x16xf32>
    %c0_3 = arith.constant 0 : index
    %c0_4 = arith.constant 0 : index
    %2 = vector.load %arg2[%c0_3, %c0_4] : memref<2x32xf32, #tpu.memory_space<vmem>>, vector<2x32xf32>
    %3 = vector.extract_strided_slice %2 {offsets = [0, 0], sizes = [1, 32], strides = [1, 1]} : vector<2x32xf32> to vector<1x32xf32>
    %4 = vector.extract_strided_slice %2 {offsets = [1, 0], sizes = [1, 32], strides = [1, 1]} : vector<2x32xf32> to vector<1x32xf32>
    %cst = arith.constant dense<0.000000e+00> : vector<16xf32>
    %5 = vector.multi_reduction <add>, %0, %cst [1] : vector<16x32xf32> to vector<16xf32>
    %6 = vector.shape_cast %5 : vector<16xf32> to vector<16x1xf32>
    %cst_5 = arith.constant 3.200000e+01 : f32
    %7 = vector.broadcast %cst_5 : f32 to vector<16x1xf32>
    %8 = arith.divf %6, %7 : vector<16x1xf32>
    %9 = arith.mulf %0, %0 : vector<16x32xf32>
    %cst_6 = arith.constant dense<0.000000e+00> : vector<16xf32>
    %10 = vector.multi_reduction <add>, %9, %cst_6 [1] : vector<16x32xf32> to vector<16xf32>
    %11 = vector.shape_cast %10 : vector<16xf32> to vector<16x1xf32>
    %cst_7 = arith.constant 3.200000e+01 : f32
    %12 = vector.broadcast %cst_7 : f32 to vector<16x1xf32>
    %13 = arith.divf %11, %12 : vector<16x1xf32>
    %14 = vector.broadcast %8 : vector<16x1xf32> to vector<16x32xf32>
    %15 = arith.subf %0, %14 : vector<16x32xf32>
    %16 = arith.mulf %8, %8 : vector<16x1xf32>
    %17 = arith.subf %13, %16 : vector<16x1xf32>
    %cst_8 = arith.constant 9.99999996E-13 : f32
    %18 = vector.broadcast %cst_8 : f32 to vector<16x1xf32>
    %19 = arith.addf %17, %18 : vector<16x1xf32>
    %20 = math.rsqrt %19 : vector<16x1xf32>
    %21 = vector.broadcast %20 : vector<16x1xf32> to vector<16x32xf32>
    %22 = arith.mulf %15, %21 : vector<16x32xf32>
    %23 = vector.broadcast %3 : vector<1x32xf32> to vector<16x32xf32>
    %24 = arith.mulf %22, %23 : vector<16x32xf32>
    %25 = vector.broadcast %4 : vector<1x32xf32> to vector<16x32xf32>
    %26 = arith.addf %24, %25 : vector<16x32xf32>
    %c0_9 = arith.constant 0 : index
    %c0_10 = arith.constant 0 : index
    %c0_11 = arith.constant 0 : index
    %27 = vector.load %arg3[%c0_9, %c0_10, %c0_11] : memref<2x32x128xf32, #tpu.memory_space<vmem>>, vector<1x32x128xf32>
    %28 = vector.shape_cast %27 : vector<1x32x128xf32> to vector<32x128xf32>
    %c0_12 = arith.constant 0 : index
    %c0_13 = arith.constant 0 : index
    %c0_14 = arith.constant 0 : index
    %29 = vector.load %arg4[%c0_12, %c0_13, %c0_14] : memref<2x64x64xf32, #tpu.memory_space<vmem>>, vector<1x64x64xf32>
    %30 = vector.shape_cast %29 : vector<1x64x64xf32> to vector<64x64xf32>
    %c0_15 = arith.constant 0 : index
    %c0_16 = arith.constant 0 : index
    %c0_17 = arith.constant 0 : index
    %31 = vector.load %arg5[%c0_15, %c0_16, %c0_17] : memref<2x8x128xf32, #tpu.memory_space<vmem>>, vector<1x8x128xf32>
    %32 = vector.shape_cast %31 : vector<1x8x128xf32> to vector<8x128xf32>
    %33 = vector.extract_strided_slice %32 {offsets = [0, 0], sizes = [1, 96], strides = [1, 1]} : vector<8x128xf32> to vector<1x96xf32>
    %34 = vector.extract_strided_slice %32 {offsets = [1, 0], sizes = [1, 32], strides = [1, 1]} : vector<8x128xf32> to vector<1x32xf32>
    %35 = vector.extract_strided_slice %32 {offsets = [2, 0], sizes = [1, 32], strides = [1, 1]} : vector<8x128xf32> to vector<1x32xf32>
    %36 = vector.extract_strided_slice %32 {offsets = [3, 0], sizes = [1, 32], strides = [1, 1]} : vector<8x128xf32> to vector<1x32xf32>
    %37 = vector.extract_strided_slice %32 {offsets = [4, 0], sizes = [1, 64], strides = [1, 1]} : vector<8x128xf32> to vector<1x64xf32>
    %38 = vector.extract_strided_slice %32 {offsets = [5, 0], sizes = [1, 32], strides = [1, 1]} : vector<8x128xf32> to vector<1x32xf32>
    %39 = vector.extract_strided_slice %32 {offsets = [6, 0], sizes = [1, 32], strides = [1, 1]} : vector<8x128xf32> to vector<1x32xf32>
    %40 = vector.extract_strided_slice %32 {offsets = [7, 0], sizes = [1, 32], strides = [1, 1]} : vector<8x128xf32> to vector<1x32xf32>
    %41 = vector.extract_strided_slice %28 {offsets = [0, 0], sizes = [32, 96], strides = [1, 1]} : vector<32x128xf32> to vector<32x96xf32>
    %cst_18 = arith.constant dense<0.000000e+00> : vector<16x96xf32>
    %42 = tpu.matmul %26, %41, %cst_18 {dimension_numbers = #tpu.dot_dimension_numbers<[1], [0], [0], [1], [0, 0, 1, 1], [], []>} : vector<16x32xf32>, vector<32x96xf32>, vector<16x96xf32> -> vector<16x96xf32>
    %43 = vector.broadcast %33 : vector<1x96xf32> to vector<16x96xf32>
    %44 = arith.addf %42, %43 : vector<16x96xf32>
    %45 = vector.extract_strided_slice %44 {offsets = [0, 0], sizes = [16, 32], strides = [1, 1]} : vector<16x96xf32> to vector<16x32xf32>
    %46 = vector.extract_strided_slice %44 {offsets = [0, 32], sizes = [16, 32], strides = [1, 1]} : vector<16x96xf32> to vector<16x32xf32>
    %47 = vector.extract_strided_slice %44 {offsets = [0, 64], sizes = [16, 32], strides = [1, 1]} : vector<16x96xf32> to vector<16x32xf32>
    %48 = vector.extract_strided_slice %28 {offsets = [0, 96], sizes = [32, 32], strides = [1, 1]} : vector<32x128xf32> to vector<32x32xf32>
    %49 = vector.extract_strided_slice %45 {offsets = [0, 0], sizes = [16, 16], strides = [1, 1]} : vector<16x32xf32> to vector<16x16xf32>
    %50 = vector.extract_strided_slice %46 {offsets = [0, 0], sizes = [16, 16], strides = [1, 1]} : vector<16x32xf32> to vector<16x16xf32>
    %51 = vector.extract_strided_slice %47 {offsets = [0, 0], sizes = [16, 16], strides = [1, 1]} : vector<16x32xf32> to vector<16x16xf32>
    %cst_19 = arith.constant dense<0.000000e+00> : vector<16x16xf32>
    %52 = tpu.matmul %49, %50, %cst_19 {dimension_numbers = #tpu.dot_dimension_numbers<[1], [1], [0], [0], [0, 0, 1, 0], [], []>} : vector<16x16xf32>, vector<16x16xf32>, vector<16x16xf32> -> vector<16x16xf32>
    %cst_20 = arith.constant 2.500000e-01 : f32
    %53 = vector.broadcast %cst_20 : f32 to vector<16x16xf32>
    %54 = arith.mulf %52, %53 : vector<16x16xf32>
    %55 = arith.addf %54, %1 : vector<16x16xf32>
    %cst_21 = arith.constant dense<0xFF800000> : vector<16xf32>
    %56 = vector.multi_reduction <maximumf>, %55, %cst_21 [1] : vector<16x16xf32> to vector<16xf32>
    %57 = vector.shape_cast %56 : vector<16xf32> to vector<16x1xf32>
    %58 = vector.broadcast %57 : vector<16x1xf32> to vector<16x16xf32>
    %59 = arith.subf %55, %58 : vector<16x16xf32>
    %60 = math.exp %59 : vector<16x16xf32>
    %cst_22 = arith.constant dense<0.000000e+00> : vector<16xf32>
    %61 = vector.multi_reduction <add>, %60, %cst_22 [1] : vector<16x16xf32> to vector<16xf32>
    %62 = vector.shape_cast %61 : vector<16xf32> to vector<16x1xf32>
    %63 = tpu.reciprocal %62 {approx = true} : vector<16x1xf32> -> vector<16x1xf32>
    %64 = vector.broadcast %63 : vector<16x1xf32> to vector<16x16xf32>
    %65 = arith.mulf %60, %64 : vector<16x16xf32>
    %cst_23 = arith.constant dense<0.000000e+00> : vector<16x16xf32>
    %66 = tpu.matmul %65, %51, %cst_23 {dimension_numbers = #tpu.dot_dimension_numbers<[1], [0], [0], [1], [0, 0, 1, 1], [], []>} : vector<16x16xf32>, vector<16x16xf32>, vector<16x16xf32> -> vector<16x16xf32>
    %67 = vector.extract_strided_slice %45 {offsets = [0, 16], sizes = [16, 16], strides = [1, 1]} : vector<16x32xf32> to vector<16x16xf32>
    %68 = vector.extract_strided_slice %46 {offsets = [0, 16], sizes = [16, 16], strides = [1, 1]} : vector<16x32xf32> to vector<16x16xf32>
    %69 = vector.extract_strided_slice %47 {offsets = [0, 16], sizes = [16, 16], strides = [1, 1]} : vector<16x32xf32> to vector<16x16xf32>
    %cst_24 = arith.constant dense<0.000000e+00> : vector<16x16xf32>
    %70 = tpu.matmul %67, %68, %cst_24 {dimension_numbers = #tpu.dot_dimension_numbers<[1], [1], [0], [0], [0, 0, 1, 0], [], []>} : vector<16x16xf32>, vector<16x16xf32>, vector<16x16xf32> -> vector<16x16xf32>
    %cst_25 = arith.constant 2.500000e-01 : f32
    %71 = vector.broadcast %cst_25 : f32 to vector<16x16xf32>
    %72 = arith.mulf %70, %71 : vector<16x16xf32>
    %73 = arith.addf %72, %1 : vector<16x16xf32>
    %cst_26 = arith.constant dense<0xFF800000> : vector<16xf32>
    %74 = vector.multi_reduction <maximumf>, %73, %cst_26 [1] : vector<16x16xf32> to vector<16xf32>
    %75 = vector.shape_cast %74 : vector<16xf32> to vector<16x1xf32>
    %76 = vector.broadcast %75 : vector<16x1xf32> to vector<16x16xf32>
    %77 = arith.subf %73, %76 : vector<16x16xf32>
    %78 = math.exp %77 : vector<16x16xf32>
    %cst_27 = arith.constant dense<0.000000e+00> : vector<16xf32>
    %79 = vector.multi_reduction <add>, %78, %cst_27 [1] : vector<16x16xf32> to vector<16xf32>
    %80 = vector.shape_cast %79 : vector<16xf32> to vector<16x1xf32>
    %81 = tpu.reciprocal %80 {approx = true} : vector<16x1xf32> -> vector<16x1xf32>
    %82 = vector.broadcast %81 : vector<16x1xf32> to vector<16x16xf32>
    %83 = arith.mulf %78, %82 : vector<16x16xf32>
    %cst_28 = arith.constant dense<0.000000e+00> : vector<16x16xf32>
    %84 = tpu.matmul %83, %69, %cst_28 {dimension_numbers = #tpu.dot_dimension_numbers<[1], [0], [0], [1], [0, 0, 1, 1], [], []>} : vector<16x16xf32>, vector<16x16xf32>, vector<16x16xf32> -> vector<16x16xf32>
    %85 = tpu.concatenate %66, %84 in 1 : vector<16x16xf32>, vector<16x16xf32> -> vector<16x32xf32>
    %cst_29 = arith.constant dense<0.000000e+00> : vector<16x32xf32>
    %86 = tpu.matmul %85, %48, %cst_29 {dimension_numbers = #tpu.dot_dimension_numbers<[1], [0], [0], [1], [0, 0, 1, 1], [], []>} : vector<16x32xf32>, vector<32x32xf32>, vector<16x32xf32> -> vector<16x32xf32>
    %87 = vector.broadcast %34 : vector<1x32xf32> to vector<16x32xf32>
    %88 = arith.addf %86, %87 : vector<16x32xf32>
    %89 = arith.addf %26, %88 : vector<16x32xf32>
    %cst_30 = arith.constant dense<0.000000e+00> : vector<16xf32>
    %90 = vector.multi_reduction <add>, %89, %cst_30 [1] : vector<16x32xf32> to vector<16xf32>
    %91 = vector.shape_cast %90 : vector<16xf32> to vector<16x1xf32>
    %cst_31 = arith.constant 3.200000e+01 : f32
    %92 = vector.broadcast %cst_31 : f32 to vector<16x1xf32>
    %93 = arith.divf %91, %92 : vector<16x1xf32>
    %94 = arith.mulf %89, %89 : vector<16x32xf32>
    %cst_32 = arith.constant dense<0.000000e+00> : vector<16xf32>
    %95 = vector.multi_reduction <add>, %94, %cst_32 [1] : vector<16x32xf32> to vector<16xf32>
    %96 = vector.shape_cast %95 : vector<16xf32> to vector<16x1xf32>
    %cst_33 = arith.constant 3.200000e+01 : f32
    %97 = vector.broadcast %cst_33 : f32 to vector<16x1xf32>
    %98 = arith.divf %96, %97 : vector<16x1xf32>
    %99 = vector.broadcast %93 : vector<16x1xf32> to vector<16x32xf32>
    %100 = arith.subf %89, %99 : vector<16x32xf32>
    %101 = arith.mulf %93, %93 : vector<16x1xf32>
    %102 = arith.subf %98, %101 : vector<16x1xf32>
    %cst_34 = arith.constant 9.99999996E-13 : f32
    %103 = vector.broadcast %cst_34 : f32 to vector<16x1xf32>
    %104 = arith.addf %102, %103 : vector<16x1xf32>
    %105 = math.rsqrt %104 : vector<16x1xf32>
    %106 = vector.broadcast %105 : vector<16x1xf32> to vector<16x32xf32>
    %107 = arith.mulf %100, %106 : vector<16x32xf32>
    %108 = vector.broadcast %35 : vector<1x32xf32> to vector<16x32xf32>
    %109 = arith.mulf %107, %108 : vector<16x32xf32>
    %110 = vector.broadcast %36 : vector<1x32xf32> to vector<16x32xf32>
    %111 = arith.addf %109, %110 : vector<16x32xf32>
    %112 = vector.extract_strided_slice %30 {offsets = [0, 0], sizes = [32, 64], strides = [1, 1]} : vector<64x64xf32> to vector<32x64xf32>
    %cst_35 = arith.constant dense<0.000000e+00> : vector<16x64xf32>
    %113 = tpu.matmul %111, %112, %cst_35 {dimension_numbers = #tpu.dot_dimension_numbers<[1], [0], [0], [1], [0, 0, 1, 1], [], []>} : vector<16x32xf32>, vector<32x64xf32>, vector<16x64xf32> -> vector<16x64xf32>
    %114 = vector.broadcast %37 : vector<1x64xf32> to vector<16x64xf32>
    %115 = arith.addf %113, %114 : vector<16x64xf32>
    %116 = arith.mulf %115, %115 : vector<16x64xf32>
    %117 = arith.mulf %115, %116 : vector<16x64xf32>
    %cst_36 = arith.constant 4.471500e-02 : f32
    %118 = vector.broadcast %cst_36 : f32 to vector<16x64xf32>
    %119 = arith.mulf %118, %117 : vector<16x64xf32>
    %120 = arith.addf %115, %119 : vector<16x64xf32>
    %cst_37 = arith.constant 0.797884583 : f32
    %121 = vector.broadcast %cst_37 : f32 to vector<16x64xf32>
    %122 = arith.mulf %121, %120 : vector<16x64xf32>
    %123 = math.tanh %122 : vector<16x64xf32>
    %cst_38 = arith.constant 1.000000e+00 : f32
    %124 = vector.broadcast %cst_38 : f32 to vector<16x64xf32>
    %125 = arith.addf %124, %123 : vector<16x64xf32>
    %cst_39 = arith.constant 5.000000e-01 : f32
    %126 = vector.broadcast %cst_39 : f32 to vector<16x64xf32>
    %127 = arith.mulf %126, %125 : vector<16x64xf32>
    %128 = arith.mulf %115, %127 : vector<16x64xf32>
    %129 = vector.extract_strided_slice %30 {offsets = [32, 0], sizes = [32, 64], strides = [1, 1]} : vector<64x64xf32> to vector<32x64xf32>
    %cst_40 = arith.constant dense<0.000000e+00> : vector<16x32xf32>
    %130 = tpu.matmul %128, %129, %cst_40 {dimension_numbers = #tpu.dot_dimension_numbers<[1], [1], [0], [0], [0, 0, 1, 0], [], []>} : vector<16x64xf32>, vector<32x64xf32>, vector<16x32xf32> -> vector<16x32xf32>
    %131 = vector.broadcast %38 : vector<1x32xf32> to vector<16x32xf32>
    %132 = arith.addf %130, %131 : vector<16x32xf32>
    %133 = arith.addf %111, %132 : vector<16x32xf32>
    %cst_41 = arith.constant dense<0.000000e+00> : vector<16xf32>
    %134 = vector.multi_reduction <add>, %133, %cst_41 [1] : vector<16x32xf32> to vector<16xf32>
    %135 = vector.shape_cast %134 : vector<16xf32> to vector<16x1xf32>
    %cst_42 = arith.constant 3.200000e+01 : f32
    %136 = vector.broadcast %cst_42 : f32 to vector<16x1xf32>
    %137 = arith.divf %135, %136 : vector<16x1xf32>
    %138 = arith.mulf %133, %133 : vector<16x32xf32>
    %cst_43 = arith.constant dense<0.000000e+00> : vector<16xf32>
    %139 = vector.multi_reduction <add>, %138, %cst_43 [1] : vector<16x32xf32> to vector<16xf32>
    %140 = vector.shape_cast %139 : vector<16xf32> to vector<16x1xf32>
    %cst_44 = arith.constant 3.200000e+01 : f32
    %141 = vector.broadcast %cst_44 : f32 to vector<16x1xf32>
    %142 = arith.divf %140, %141 : vector<16x1xf32>
    %143 = vector.broadcast %137 : vector<16x1xf32> to vector<16x32xf32>
    %144 = arith.subf %133, %143 : vector<16x32xf32>
    %145 = arith.mulf %137, %137 : vector<16x1xf32>
    %146 = arith.subf %142, %145 : vector<16x1xf32>
    %cst_45 = arith.constant 9.99999996E-13 : f32
    %147 = vector.broadcast %cst_45 : f32 to vector<16x1xf32>
    %148 = arith.addf %146, %147 : vector<16x1xf32>
    %149 = math.rsqrt %148 : vector<16x1xf32>
    %150 = vector.broadcast %149 : vector<16x1xf32> to vector<16x32xf32>
    %151 = arith.mulf %144, %150 : vector<16x32xf32>
    %152 = vector.broadcast %39 : vector<1x32xf32> to vector<16x32xf32>
    %153 = arith.mulf %151, %152 : vector<16x32xf32>
    %154 = vector.broadcast %40 : vector<1x32xf32> to vector<16x32xf32>
    %155 = arith.addf %153, %154 : vector<16x32xf32>
    %c1 = arith.constant 1 : index
    %c0_46 = arith.constant 0 : index
    %c0_47 = arith.constant 0 : index
    %156 = vector.load %arg3[%c1, %c0_46, %c0_47] : memref<2x32x128xf32, #tpu.memory_space<vmem>>, vector<1x32x128xf32>
    %157 = vector.shape_cast %156 : vector<1x32x128xf32> to vector<32x128xf32>
    %c1_48 = arith.constant 1 : index
    %c0_49 = arith.constant 0 : index
    %c0_50 = arith.constant 0 : index
    %158 = vector.load %arg4[%c1_48, %c0_49, %c0_50] : memref<2x64x64xf32, #tpu.memory_space<vmem>>, vector<1x64x64xf32>
    %159 = vector.shape_cast %158 : vector<1x64x64xf32> to vector<64x64xf32>
    %c1_51 = arith.constant 1 : index
    %c0_52 = arith.constant 0 : index
    %c0_53 = arith.constant 0 : index
    %160 = vector.load %arg5[%c1_51, %c0_52, %c0_53] : memref<2x8x128xf32, #tpu.memory_space<vmem>>, vector<1x8x128xf32>
    %161 = vector.shape_cast %160 : vector<1x8x128xf32> to vector<8x128xf32>
    %162 = vector.extract_strided_slice %161 {offsets = [0, 0], sizes = [1, 96], strides = [1, 1]} : vector<8x128xf32> to vector<1x96xf32>
    %163 = vector.extract_strided_slice %161 {offsets = [1, 0], sizes = [1, 32], strides = [1, 1]} : vector<8x128xf32> to vector<1x32xf32>
    %164 = vector.extract_strided_slice %161 {offsets = [2, 0], sizes = [1, 32], strides = [1, 1]} : vector<8x128xf32> to vector<1x32xf32>
    %165 = vector.extract_strided_slice %161 {offsets = [3, 0], sizes = [1, 32], strides = [1, 1]} : vector<8x128xf32> to vector<1x32xf32>
    %166 = vector.extract_strided_slice %161 {offsets = [4, 0], sizes = [1, 64], strides = [1, 1]} : vector<8x128xf32> to vector<1x64xf32>
    %167 = vector.extract_strided_slice %161 {offsets = [5, 0], sizes = [1, 32], strides = [1, 1]} : vector<8x128xf32> to vector<1x32xf32>
    %168 = vector.extract_strided_slice %161 {offsets = [6, 0], sizes = [1, 32], strides = [1, 1]} : vector<8x128xf32> to vector<1x32xf32>
    %169 = vector.extract_strided_slice %161 {offsets = [7, 0], sizes = [1, 32], strides = [1, 1]} : vector<8x128xf32> to vector<1x32xf32>
    %170 = vector.extract_strided_slice %157 {offsets = [0, 0], sizes = [32, 96], strides = [1, 1]} : vector<32x128xf32> to vector<32x96xf32>
    %cst_54 = arith.constant dense<0.000000e+00> : vector<16x96xf32>
    %171 = tpu.matmul %155, %170, %cst_54 {dimension_numbers = #tpu.dot_dimension_numbers<[1], [0], [0], [1], [0, 0, 1, 1], [], []>} : vector<16x32xf32>, vector<32x96xf32>, vector<16x96xf32> -> vector<16x96xf32>
    %172 = vector.broadcast %162 : vector<1x96xf32> to vector<16x96xf32>
    %173 = arith.addf %171, %172 : vector<16x96xf32>
    %174 = vector.extract_strided_slice %173 {offsets = [0, 0], sizes = [16, 32], strides = [1, 1]} : vector<16x96xf32> to vector<16x32xf32>
    %175 = vector.extract_strided_slice %173 {offsets = [0, 32], sizes = [16, 32], strides = [1, 1]} : vector<16x96xf32> to vector<16x32xf32>
    %176 = vector.extract_strided_slice %173 {offsets = [0, 64], sizes = [16, 32], strides = [1, 1]} : vector<16x96xf32> to vector<16x32xf32>
    %177 = vector.extract_strided_slice %157 {offsets = [0, 96], sizes = [32, 32], strides = [1, 1]} : vector<32x128xf32> to vector<32x32xf32>
    %178 = vector.extract_strided_slice %174 {offsets = [0, 0], sizes = [16, 16], strides = [1, 1]} : vector<16x32xf32> to vector<16x16xf32>
    %179 = vector.extract_strided_slice %175 {offsets = [0, 0], sizes = [16, 16], strides = [1, 1]} : vector<16x32xf32> to vector<16x16xf32>
    %180 = vector.extract_strided_slice %176 {offsets = [0, 0], sizes = [16, 16], strides = [1, 1]} : vector<16x32xf32> to vector<16x16xf32>
    %cst_55 = arith.constant dense<0.000000e+00> : vector<16x16xf32>
    %181 = tpu.matmul %178, %179, %cst_55 {dimension_numbers = #tpu.dot_dimension_numbers<[1], [1], [0], [0], [0, 0, 1, 0], [], []>} : vector<16x16xf32>, vector<16x16xf32>, vector<16x16xf32> -> vector<16x16xf32>
    %cst_56 = arith.constant 2.500000e-01 : f32
    %182 = vector.broadcast %cst_56 : f32 to vector<16x16xf32>
    %183 = arith.mulf %181, %182 : vector<16x16xf32>
    %184 = arith.addf %183, %1 : vector<16x16xf32>
    %cst_57 = arith.constant dense<0xFF800000> : vector<16xf32>
    %185 = vector.multi_reduction <maximumf>, %184, %cst_57 [1] : vector<16x16xf32> to vector<16xf32>
    %186 = vector.shape_cast %185 : vector<16xf32> to vector<16x1xf32>
    %187 = vector.broadcast %186 : vector<16x1xf32> to vector<16x16xf32>
    %188 = arith.subf %184, %187 : vector<16x16xf32>
    %189 = math.exp %188 : vector<16x16xf32>
    %cst_58 = arith.constant dense<0.000000e+00> : vector<16xf32>
    %190 = vector.multi_reduction <add>, %189, %cst_58 [1] : vector<16x16xf32> to vector<16xf32>
    %191 = vector.shape_cast %190 : vector<16xf32> to vector<16x1xf32>
    %192 = tpu.reciprocal %191 {approx = true} : vector<16x1xf32> -> vector<16x1xf32>
    %193 = vector.broadcast %192 : vector<16x1xf32> to vector<16x16xf32>
    %194 = arith.mulf %189, %193 : vector<16x16xf32>
    %cst_59 = arith.constant dense<0.000000e+00> : vector<16x16xf32>
    %195 = tpu.matmul %194, %180, %cst_59 {dimension_numbers = #tpu.dot_dimension_numbers<[1], [0], [0], [1], [0, 0, 1, 1], [], []>} : vector<16x16xf32>, vector<16x16xf32>, vector<16x16xf32> -> vector<16x16xf32>
    %196 = vector.extract_strided_slice %174 {offsets = [0, 16], sizes = [16, 16], strides = [1, 1]} : vector<16x32xf32> to vector<16x16xf32>
    %197 = vector.extract_strided_slice %175 {offsets = [0, 16], sizes = [16, 16], strides = [1, 1]} : vector<16x32xf32> to vector<16x16xf32>
    %198 = vector.extract_strided_slice %176 {offsets = [0, 16], sizes = [16, 16], strides = [1, 1]} : vector<16x32xf32> to vector<16x16xf32>
    %cst_60 = arith.constant dense<0.000000e+00> : vector<16x16xf32>
    %199 = tpu.matmul %196, %197, %cst_60 {dimension_numbers = #tpu.dot_dimension_numbers<[1], [1], [0], [0], [0, 0, 1, 0], [], []>} : vector<16x16xf32>, vector<16x16xf32>, vector<16x16xf32> -> vector<16x16xf32>
    %cst_61 = arith.constant 2.500000e-01 : f32
    %200 = vector.broadcast %cst_61 : f32 to vector<16x16xf32>
    %201 = arith.mulf %199, %200 : vector<16x16xf32>
    %202 = arith.addf %201, %1 : vector<16x16xf32>
    %cst_62 = arith.constant dense<0xFF800000> : vector<16xf32>
    %203 = vector.multi_reduction <maximumf>, %202, %cst_62 [1] : vector<16x16xf32> to vector<16xf32>
    %204 = vector.shape_cast %203 : vector<16xf32> to vector<16x1xf32>
    %205 = vector.broadcast %204 : vector<16x1xf32> to vector<16x16xf32>
    %206 = arith.subf %202, %205 : vector<16x16xf32>
    %207 = math.exp %206 : vector<16x16xf32>
    %cst_63 = arith.constant dense<0.000000e+00> : vector<16xf32>
    %208 = vector.multi_reduction <add>, %207, %cst_63 [1] : vector<16x16xf32> to vector<16xf32>
    %209 = vector.shape_cast %208 : vector<16xf32> to vector<16x1xf32>
    %210 = tpu.reciprocal %209 {approx = true} : vector<16x1xf32> -> vector<16x1xf32>
    %211 = vector.broadcast %210 : vector<16x1xf32> to vector<16x16xf32>
    %212 = arith.mulf %207, %211 : vector<16x16xf32>
    %cst_64 = arith.constant dense<0.000000e+00> : vector<16x16xf32>
    %213 = tpu.matmul %212, %198, %cst_64 {dimension_numbers = #tpu.dot_dimension_numbers<[1], [0], [0], [1], [0, 0, 1, 1], [], []>} : vector<16x16xf32>, vector<16x16xf32>, vector<16x16xf32> -> vector<16x16xf32>
    %214 = tpu.concatenate %195, %213 in 1 : vector<16x16xf32>, vector<16x16xf32> -> vector<16x32xf32>
    %cst_65 = arith.constant dense<0.000000e+00> : vector<16x32xf32>
    %215 = tpu.matmul %214, %177, %cst_65 {dimension_numbers = #tpu.dot_dimension_numbers<[1], [0], [0], [1], [0, 0, 1, 1], [], []>} : vector<16x32xf32>, vector<32x32xf32>, vector<16x32xf32> -> vector<16x32xf32>
    %216 = vector.broadcast %163 : vector<1x32xf32> to vector<16x32xf32>
    %217 = arith.addf %215, %216 : vector<16x32xf32>
    %218 = arith.addf %155, %217 : vector<16x32xf32>
    %cst_66 = arith.constant dense<0.000000e+00> : vector<16xf32>
    %219 = vector.multi_reduction <add>, %218, %cst_66 [1] : vector<16x32xf32> to vector<16xf32>
    %220 = vector.shape_cast %219 : vector<16xf32> to vector<16x1xf32>
    %cst_67 = arith.constant 3.200000e+01 : f32
    %221 = vector.broadcast %cst_67 : f32 to vector<16x1xf32>
    %222 = arith.divf %220, %221 : vector<16x1xf32>
    %223 = arith.mulf %218, %218 : vector<16x32xf32>
    %cst_68 = arith.constant dense<0.000000e+00> : vector<16xf32>
    %224 = vector.multi_reduction <add>, %223, %cst_68 [1] : vector<16x32xf32> to vector<16xf32>
    %225 = vector.shape_cast %224 : vector<16xf32> to vector<16x1xf32>
    %cst_69 = arith.constant 3.200000e+01 : f32
    %226 = vector.broadcast %cst_69 : f32 to vector<16x1xf32>
    %227 = arith.divf %225, %226 : vector<16x1xf32>
    %228 = vector.broadcast %222 : vector<16x1xf32> to vector<16x32xf32>
    %229 = arith.subf %218, %228 : vector<16x32xf32>
    %230 = arith.mulf %222, %222 : vector<16x1xf32>
    %231 = arith.subf %227, %230 : vector<16x1xf32>
    %cst_70 = arith.constant 9.99999996E-13 : f32
    %232 = vector.broadcast %cst_70 : f32 to vector<16x1xf32>
    %233 = arith.addf %231, %232 : vector<16x1xf32>
    %234 = math.rsqrt %233 : vector<16x1xf32>
    %235 = vector.broadcast %234 : vector<16x1xf32> to vector<16x32xf32>
    %236 = arith.mulf %229, %235 : vector<16x32xf32>
    %237 = vector.broadcast %164 : vector<1x32xf32> to vector<16x32xf32>
    %238 = arith.mulf %236, %237 : vector<16x32xf32>
    %239 = vector.broadcast %165 : vector<1x32xf32> to vector<16x32xf32>
    %240 = arith.addf %238, %239 : vector<16x32xf32>
    %241 = vector.extract_strided_slice %159 {offsets = [0, 0], sizes = [32, 64], strides = [1, 1]} : vector<64x64xf32> to vector<32x64xf32>
    %cst_71 = arith.constant dense<0.000000e+00> : vector<16x64xf32>
    %242 = tpu.matmul %240, %241, %cst_71 {dimension_numbers = #tpu.dot_dimension_numbers<[1], [0], [0], [1], [0, 0, 1, 1], [], []>} : vector<16x32xf32>, vector<32x64xf32>, vector<16x64xf32> -> vector<16x64xf32>
    %243 = vector.broadcast %166 : vector<1x64xf32> to vector<16x64xf32>
    %244 = arith.addf %242, %243 : vector<16x64xf32>
    %245 = arith.mulf %244, %244 : vector<16x64xf32>
    %246 = arith.mulf %244, %245 : vector<16x64xf32>
    %cst_72 = arith.constant 4.471500e-02 : f32
    %247 = vector.broadcast %cst_72 : f32 to vector<16x64xf32>
    %248 = arith.mulf %247, %246 : vector<16x64xf32>
    %249 = arith.addf %244, %248 : vector<16x64xf32>
    %cst_73 = arith.constant 0.797884583 : f32
    %250 = vector.broadcast %cst_73 : f32 to vector<16x64xf32>
    %251 = arith.mulf %250, %249 : vector<16x64xf32>
    %252 = math.tanh %251 : vector<16x64xf32>
    %cst_74 = arith.constant 1.000000e+00 : f32
    %253 = vector.broadcast %cst_74 : f32 to vector<16x64xf32>
    %254 = arith.addf %253, %252 : vector<16x64xf32>
    %cst_75 = arith.constant 5.000000e-01 : f32
    %255 = vector.broadcast %cst_75 : f32 to vector<16x64xf32>
    %256 = arith.mulf %255, %254 : vector<16x64xf32>
    %257 = arith.mulf %244, %256 : vector<16x64xf32>
    %258 = vector.extract_strided_slice %159 {offsets = [32, 0], sizes = [32, 64], strides = [1, 1]} : vector<64x64xf32> to vector<32x64xf32>
    %cst_76 = arith.constant dense<0.000000e+00> : vector<16x32xf32>
    %259 = tpu.matmul %257, %258, %cst_76 {dimension_numbers = #tpu.dot_dimension_numbers<[1], [1], [0], [0], [0, 0, 1, 0], [], []>} : vector<16x64xf32>, vector<32x64xf32>, vector<16x32xf32> -> vector<16x32xf32>
    %260 = vector.broadcast %167 : vector<1x32xf32> to vector<16x32xf32>
    %261 = arith.addf %259, %260 : vector<16x32xf32>
    %262 = arith.addf %240, %261 : vector<16x32xf32>
    %cst_77 = arith.constant dense<0.000000e+00> : vector<16xf32>
    %263 = vector.multi_reduction <add>, %262, %cst_77 [1] : vector<16x32xf32> to vector<16xf32>
    %264 = vector.shape_cast %263 : vector<16xf32> to vector<16x1xf32>
    %cst_78 = arith.constant 3.200000e+01 : f32
    %265 = vector.broadcast %cst_78 : f32 to vector<16x1xf32>
    %266 = arith.divf %264, %265 : vector<16x1xf32>
    %267 = arith.mulf %262, %262 : vector<16x32xf32>
    %cst_79 = arith.constant dense<0.000000e+00> : vector<16xf32>
    %268 = vector.multi_reduction <add>, %267, %cst_79 [1] : vector<16x32xf32> to vector<16xf32>
    %269 = vector.shape_cast %268 : vector<16xf32> to vector<16x1xf32>
    %cst_80 = arith.constant 3.200000e+01 : f32
    %270 = vector.broadcast %cst_80 : f32 to vector<16x1xf32>
    %271 = arith.divf %269, %270 : vector<16x1xf32>
    %272 = vector.broadcast %266 : vector<16x1xf32> to vector<16x32xf32>
    %273 = arith.subf %262, %272 : vector<16x32xf32>
    %274 = arith.mulf %266, %266 : vector<16x1xf32>
    %275 = arith.subf %271, %274 : vector<16x1xf32>
    %cst_81 = arith.constant 9.99999996E-13 : f32
    %276 = vector.broadcast %cst_81 : f32 to vector<16x1xf32>
    %277 = arith.addf %275, %276 : vector<16x1xf32>
    %278 = math.rsqrt %277 : vector<16x1xf32>
    %279 = vector.broadcast %278 : vector<16x1xf32> to vector<16x32xf32>
    %280 = arith.mulf %273, %279 : vector<16x32xf32>
    %281 = vector.broadcast %168 : vector<1x32xf32> to vector<16x32xf32>
    %282 = arith.mulf %280, %281 : vector<16x32xf32>
    %283 = vector.broadcast %169 : vector<1x32xf32> to vector<16x32xf32>
    %284 = arith.addf %282, %283 : vector<16x32xf32>
    %285 = vector.extract_strided_slice %284 {offsets = [0, 0], sizes = [8, 32], strides = [1, 1]} : vector<16x32xf32> to vector<8x32xf32>
    %cst_82 = arith.constant dense<0.000000e+00> : vector<32xf32>
    %286 = vector.multi_reduction <add>, %285, %cst_82 [0] : vector<8x32xf32> to vector<32xf32>
    %287 = vector.shape_cast %286 : vector<32xf32> to vector<1x32xf32>
    %288 = vector.extract_strided_slice %284 {offsets = [8, 0], sizes = [8, 32], strides = [1, 1]} : vector<16x32xf32> to vector<8x32xf32>
    %cst_83 = arith.constant dense<0.000000e+00> : vector<32xf32>
    %289 = vector.multi_reduction <add>, %288, %cst_83 [0] : vector<8x32xf32> to vector<32xf32>
    %290 = vector.shape_cast %289 : vector<32xf32> to vector<1x32xf32>
    %291 = tpu.concatenate %287, %290 in 0 : vector<1x32xf32>, vector<1x32xf32> -> vector<2x32xf32>
    %cst_84 = arith.constant 1.250000e-01 : f32
    %292 = vector.broadcast %cst_84 : f32 to vector<2x32xf32>
    %293 = arith.mulf %291, %292 : vector<2x32xf32>
    %c0_85 = arith.constant 0 : index
    %c0_86 = arith.constant 0 : index
    %294 = vector.load %arg6[%c0_85, %c0_86] : memref<2x32xf32, #tpu.memory_space<vmem>>, vector<2x32xf32>
    tpu.vector_store %arg6[%c0_85, %c0_86], %293 {strides = array<i32>} : memref<2x32xf32, #tpu.memory_space<vmem>>, vector<2x32xf32>,
    return
  }
}

</mosaic_0001>

<llo_original>
// kernel: tpu_custom_call.1
$region0: #{tpu_custom_call.1}
  #allocation0 [shape = 'u32[]', space=smem, size = 0x4, offset = 0x4, fixed_abs, tag = 'smem constant byte address 0x4 - core index']
  #allocation1 [shape = 'u32[144,128]{1,0:T(1,128)}', space=vmem, size = 0x12000, scoped, tag = 'internal scratch']
  %s0 = inlined_call_operand.hbm [shape: f32[16,32], index: 0, kind: input, shape index: {}]
  %s1 = inlined_call_operand.hbm [shape: f32[16,16], index: 1, kind: input, shape index: {}]
  %s2 = inlined_call_operand.vmem [shape: f32[2,32], index: 2, kind: input, shape index: {}]
  %s3 = inlined_call_operand.hbm [shape: f32[2,32,128], index: 3, kind: input, shape index: {}]
  %s4 = inlined_call_operand.hbm [shape: f32[2,64,64], index: 4, kind: input, shape index: {}]
  %s5 = inlined_call_operand.vmem [shape: f32[2,8,128], index: 5, kind: input, shape index: {}]
  %s6 = inlined_call_operand.hbm [shape: f32[2,32], index: 6, kind: output, shape index: {}]
  %s7 = sld [smem:[#allocation0]]
  $region50: #{tpu_custom_call.1} parent=0
    _
  %s9 = ssub.s32 1, %s7
  %s10 = scalar_select 0, %s9, %s7
  $region1: #{tpu_custom_call.1} parent=0
    #allocation2 [shape = 'u8[8192]{0}', space=vmem, size = 0x2000, scoped, tag = 'input window, operand 0, single buffered']
    #allocation3 [shape = 's32[1]{0}', space=sflag, size = 0x4, scoped, tag = 'scoped memory for tpu_custom_call.1']
    #allocation4 [shape = 's32[1]{0}', space=sflag, size = 0x4, scoped, tag = 'scoped memory for tpu_custom_call.1']
    #allocation5 [shape = 'u8[8192]{0}', space=vmem, size = 0x2000, scoped, tag = 'input window, operand 1, single buffered']
    #allocation6 [shape = 's32[1]{0}', space=sflag, size = 0x4, scoped, tag = 'scoped memory for tpu_custom_call.1']
    #allocation7 [shape = 'u8[32768]{0}', space=vmem, size = 0x8000, scoped, tag = 'input window, operand 3, single buffered']
    #allocation8 [shape = 'u8[65536]{0}', space=vmem, size = 0x10000, scoped, tag = 'input window, operand 4, single buffered']
    #allocation9 [shape = 's32[1]{0}', space=sflag, size = 0x4, scoped, tag = 'scoped memory for tpu_custom_call.1']
    #allocation10 [shape = 'u8[1024]{0}', space=vmem, size = 0x400, scoped, tag = 'output window, operand 0, single buffered']
    %11 = vsyncpa [#allocation3], 0
    %12 = vsyncpa [#allocation6], 0
    %13 = vsyncpa [#allocation9], 0
    %14 = vsyncpa [#allocation4], 0
    // Predicated region
    $region2: #{tpu_custom_call.1} parent=1 // pred_check
      _
    $region3: #{tpu_custom_call.1} parent=1 // pred_check_branch
      %16 = sbr.rel (0) target = $region5
    $region4: #{tpu_custom_call.1} parent=1 // pred_region
      %s18 = ssub.s32 256, 256
      %19 = vsyncadd [#allocation3], %s18
      %s20 = sshll.u32 [#allocation2], 4
      %s21 = int_to_ptr.vmem [resolvable:$true] %s20
      %26 = dma.hbm_to_vmem [thread:$0]  %s0, 256, %s21, [#allocation3], 128, 128, 8
    $region5: #{tpu_custom_call.1} parent=1 // pred_fallthru
      _
    // Predicated region
    $region6: #{tpu_custom_call.1} parent=1 // pred_check
      _
    $region7: #{tpu_custom_call.1} parent=1 // pred_check_branch
      %28 = sbr.rel (0) target = $region9
    $region8: #{tpu_custom_call.1} parent=1 // pred_region
      %s30 = ssub.s32 256, 256
      %31 = vsyncadd [#allocation6], %s30
      %s32 = sshll.u32 [#allocation5], 4
      %s33 = int_to_ptr.vmem [resolvable:$true] %s32
      %38 = dma.hbm_to_vmem [thread:$0]  %s1, 256, %s33, [#allocation6], 128, 128, 8
    $region9: #{tpu_custom_call.1} parent=1 // pred_fallthru
      _
    // Predicated region
    $region10: #{tpu_custom_call.1} parent=1 // pred_check
      _
    $region11: #{tpu_custom_call.1} parent=1 // pred_check_branch
      %40 = sbr.rel (0) target = $region13
    $region12: #{tpu_custom_call.1} parent=1 // pred_region
      _
    $region13: #{tpu_custom_call.1} parent=1 // pred_fallthru
      _
    // Predicated region
    $region14: #{tpu_custom_call.1} parent=1 // pred_check
      _
    $region15: #{tpu_custom_call.1} parent=1 // pred_check_branch
      %42 = sbr.rel (0) target = $region17
    $region16: #{tpu_custom_call.1} parent=1 // pred_region
      %s44 = ssub.s32 1024, 1024
      %45 = vsyncadd [#allocation6], %s44
      %s46 = sshll.u32 [#allocation7], 4
      %s47 = int_to_ptr.vmem [resolvable:$true] %s46
      %52 = dma.hbm_to_vmem [thread:$0]  %s3, 1024, %s47, [#allocation6], 128, 128, 8
    $region17: #{tpu_custom_call.1} parent=1 // pred_fallthru
      _
    // Predicated region
    $region18: #{tpu_custom_call.1} parent=1 // pred_check
      _
    $region19: #{tpu_custom_call.1} parent=1 // pred_check_branch
      %54 = sbr.rel (0) target = $region21
    $region20: #{tpu_custom_call.1} parent=1 // pred_region
      %s56 = ssub.s32 2048, 2048
      %57 = vsyncadd [#allocation9], %s56
      %s58 = sshll.u32 [#allocation8], 4
      %s59 = int_to_ptr.vmem [resolvable:$true] %s58
      %64 = dma.hbm_to_vmem [thread:$0]  %s4, 2048, %s59, [#allocation9], 128, 128, 8
    $region21: #{tpu_custom_call.1} parent=1 // pred_fallthru
      _
    // Predicated region
    $region22: #{tpu_custom_call.1} parent=1 // pred_check
      _
    $region23: #{tpu_custom_call.1} parent=1 // pred_check_branch
      %66 = sbr.rel (0) target = $region25
    $region24: #{tpu_custom_call.1} parent=1 // pred_region
      _
    $region25: #{tpu_custom_call.1} parent=1 // pred_fallthru
      _
    // Predicated region
    $region26: #{tpu_custom_call.1} parent=1 // pred_check
      _
    $region27: #{tpu_custom_call.1} parent=1 // pred_check_branch
      %68 = sbr.rel (0) target = $region29
    $region28: #{tpu_custom_call.1} parent=1 // pred_region
      %69 = dma.done [#allocation3], 256
    $region29: #{tpu_custom_call.1} parent=1 // pred_fallthru
      _
    // Predicated region
    $region30: #{tpu_custom_call.1} parent=1 // pred_check
      _
    $region31: #{tpu_custom_call.1} parent=1 // pred_check_branch
      %71 = sbr.rel (0) target = $region33
    $region32: #{tpu_custom_call.1} parent=1 // pred_region
      %72 = dma.done [#allocation6], 256
    $region33: #{tpu_custom_call.1} parent=1 // pred_fallthru
      _
    // Predicated region
    $region34: #{tpu_custom_call.1} parent=1 // pred_check
      _
    $region35: #{tpu_custom_call.1} parent=1 // pred_check_branch
      %74 = sbr.rel (0) target = $region37
    $region36: #{tpu_custom_call.1} parent=1 // pred_region
      %75 = dma.done [#allocation6], 1024
    $region37: #{tpu_custom_call.1} parent=1 // pred_fallthru
      _
    // Predicated region
    $region38: #{tpu_custom_call.1} parent=1 // pred_check
      _
    $region39: #{tpu_custom_call.1} parent=1 // pred_check_branch
      %77 = sbr.rel (0) target = $region41
    $region40: #{tpu_custom_call.1} parent=1 // pred_region
      %78 = dma.done [#allocation9], 2048
    $region41: #{tpu_custom_call.1} parent=1 // pred_fallthru
      _
    %v79 = vld [vmem:[#allocation2] sm:$0xff]
    %v80 = vld [vmem:[#allocation2 + $0x8] sm:$0xff]
    %v81 = vld [vmem:[#allocation5] sm:$0xff]
    %v82 = vld [vmem:[#allocation5 + $0x8] sm:$0xff]
    %v83 = vld [vmem:[%s2] sm:$0x3]
    %vm84 = vcmask 261120
    %v85 = vsel %vm84, %v79, 0.0
    %86 = vadd.xlane.f32.xlu0 %v85
    %v87 = vpop.xlane.xlu0 %86
    %v88 = vsel %vm84, %v80, 0.0
    %89 = vadd.xlane.f32.xlu0 %v88
    %v90 = vpop.xlane.xlu0 %89
    %v91 = vrcp.pop 32.0
    %v92 = vmul.f32 %v87, %v91
    %v93 = vmul.f32 %v90, %v91
    %v94 = vmul.f32 %v79, %v79
    %v95 = vmul.f32 %v80, %v80
    %v96 = vsel %vm84, %v94, 0.0
    %97 = vadd.xlane.f32.xlu0 %v96
    %v98 = vpop.xlane.xlu0 %97
    %v99 = vsel %vm84, %v95, 0.0
    %100 = vadd.xlane.f32.xlu0 %v99
    %v101 = vpop.xlane.xlu0 %100
    %v102 = vmul.f32 %v98, %v91
    %v103 = vmul.f32 %v101, %v91
    %v104 = vsub.f32 %v79, %v92
    %v105 = vsub.f32 %v80, %v93
    %v106 = vmul.f32 %v92, %v92
    %v107 = vmul.f32 %v93, %v93
    %v108 = vsub.f32 %v102, %v106
    %v109 = vsub.f32 %v103, %v107
    %v110 = vadd.f32 %v108, 1e-12
    %v111 = vadd.f32 %v109, 1e-12
    %v112 = vrsqrt.pop %v110
    %v113 = vrsqrt.pop %v111
    %v114 = vmul.f32 %v104, %v112
    %v115 = vmul.f32 %v105, %v113
    %v116 = vlaneseq
    %v117 = vshrl.u32 %v116, 7
    %v118 = vsub.s32 0, %v117
    %v119 = vrot.slane %v83, %v118
    %v120 = vmul.f32 %v114, %v119
    %v121 = vmul.f32 %v115, %v119
    %v122 = vlaneseq
    %v123 = vshrl.u32 %v122, 7
    %v124 = vsub.s32 1, %v123
    %v125 = vrot.slane %v83, %v124
    %v126 = vadd.f32 %v120, %v125
    %v127 = vadd.f32 %v121, %v125
    %v128 = vld [vmem:[#allocation7] sm:$0xff]
    %v129 = vld [vmem:[#allocation7 + $0x8] sm:$0xff]
    %v130 = vld [vmem:[#allocation7 + $0x10] sm:$0xff]
    %v131 = vld [vmem:[#allocation7 + $0x18] sm:$0xff]
    %v132 = vld [vmem:[#allocation8] sm:$0xff]
    %v133 = vld [vmem:[#allocation8 + $0x8] sm:$0xff]
    %v134 = vld [vmem:[#allocation8 + $0x10] sm:$0xff]
    %v135 = vld [vmem:[#allocation8 + $0x18] sm:$0xff]
    %v136 = vld [vmem:[#allocation8 + $0x20] sm:$0xff]
    %v137 = vld [vmem:[#allocation8 + $0x28] sm:$0xff]
    %v138 = vld [vmem:[#allocation8 + $0x30] sm:$0xff]
    %v139 = vld [vmem:[#allocation8 + $0x38] sm:$0xff]
    %v140 = vld [vmem:[%s5] sm:$0xff]
    %v141 = vlaneseq
    %v142 = vshrl.u32 %v141, 7
    %v143 = vsub.s32 0, %v142
    %v144 = vrot.slane %v140, %v143
    %v146 = vsel %vm84, %v126, 0
    %v149 = vsel %vm84, %v127, 0
    %151 = vmatprep.subr.mxu0 0.0
    %152 = vmatpush1.msra.mxu0 %v128
    %153 = vmatprep.subr.mxu0 0.0
    %154 = vmatpush1.msra.mxu0 %v129
    %155 = vmatprep.subr.mxu0 0.0
    %156 = vmatpush1.msra.mxu0 %v130
    %157 = vmatprep.subr.mxu0 0.0
    %158 = vmatpush1.msra.mxu0 %v131
    %159 = vmatprep.subr.mxu0 0.0
    %160 = vmatpush1.msra.mxu0 0.0
    %161 = vmatprep.subr.mxu0 0.0
    %162 = vmatpush1.msra.mxu0 0.0
    %163 = vmatprep.subr.mxu0 0.0
    %164 = vmatpush1.msra.mxu0 0.0
    %165 = vmatprep.subr.mxu0 0.0
    %166 = vmatpush1.msra.mxu0 0.0
    %167 = vmatprep.subr.mxu0 0.0
    %168 = vmatpush1.msra.mxu0 0.0
    %169 = vmatprep.subr.mxu0 0.0
    %170 = vmatpush1.msra.mxu0 0.0
    %171 = vmatprep.subr.mxu0 0.0
    %172 = vmatpush1.msra.mxu0 0.0
    %173 = vmatprep.subr.mxu0 0.0
    %174 = vmatpush1.msra.mxu0 0.0
    %175 = vmatprep.subr.mxu0 0.0
    %176 = vmatpush1.msra.mxu0 0.0
    %177 = vmatprep.subr.mxu0 0.0
    %178 = vmatpush1.msra.mxu0 0.0
    %179 = vmatprep.subr.mxu0 0.0
    %180 = vmatpush1.msra.mxu0 0.0
    %181 = vmatprep.subr.mxu0 0.0
    %182 = vmatpush1.msra.mxu0 0.0
    %183 = vmatprep.subr.mxu0 0.0
    %184 = vmatpush1.msra.mxu0 0.0
    %185 = vmatprep.subr.mxu0 0.0
    %186 = vmatpush1.msra.mxu0 0.0
    %187 = vmatprep.subr.mxu0 0.0
    %188 = vmatpush1.msra.mxu0 0.0
    %189 = vmatprep.subr.mxu0 0.0
    %190 = vmatpush1.msra.mxu0 0.0
    %191 = vmatprep.subr.mxu0 0.0
    %192 = vmatpush1.msra.mxu0 0.0
    %193 = vmatprep.subr.mxu0 0.0
    %194 = vmatpush1.msra.mxu0 0.0
    %195 = vmatprep.subr.mxu0 0.0
    %196 = vmatpush1.msra.mxu0 0.0
    %197 = vmatprep.subr.mxu0 0.0
    %198 = vmatpush1.msra.mxu0 0.0
    %199 = vmatprep.subr.mxu0 0.0
    %200 = vmatpush1.msra.mxu0 0.0
    %201 = vmatprep.subr.mxu0 0.0
    %202 = vmatpush1.msra.mxu0 0.0
    %203 = vmatprep.subr.mxu0 0.0
    %204 = vmatpush1.msra.mxu0 0.0
    %205 = vmatprep.subr.mxu0 0.0
    %206 = vmatpush1.msra.mxu0 0.0
    %207 = vmatprep.subr.mxu0 0.0
    %208 = vmatpush1.msra.mxu0 0.0
    %209 = vmatprep.subr.mxu0 0.0
    %210 = vmatpush1.msra.mxu0 0.0
    %211 = vmatprep.subr.mxu0 0.0
    %212 = vmatpush1.msra.mxu0 0.0
    %213 = vmatprep.subr.mxu0 0.0
    %214 = vmatpush1.msra.mxu0 0.0
    %215 = vmatprep.mubr.f32.mxu0 0.0
    %216 = vmatmul.mubr.f32.gmra.mrb[0].mxu0 %v146
    %v217 = vpop.f32.mrb[0].mxu0
    %v218 = vadd.f32 %v144, %v217
    %v219 = vpop.f32.mrb[0].mxu0
    %220 = vmatprep.mubr.f32.mxu0 0.0
    %221 = vmatmul.mubr.f32.gmra.mrb[0].mxu0 %v149
    %v222 = vpop.f32.mrb[0].mxu0
    %v223 = vadd.f32 %v144, %v222
    %v224 = vpop.f32.mrb[0].mxu0
    %225 = vdwg.mxu0
    %228 = vrot.lane.b32.xlu0 %v218, 96
    %v229 = vpop.permute.xlu0 %228
    %230 = vrot.lane.b32.xlu0 %v223, 96
    %v231 = vpop.permute.xlu0 %230
    %vm232 = vcmask 130048
    %v233 = vsel %vm232, %v218, 0
    %v235 = vsel %vm232, %v223, 0
    %v237 = vsel %vm232, %v229, 0
    %v239 = vsel %vm232, %v231, 0
    %241 = vmatprep.subr.mxu0 0.0
    %242 = vmatpush1.xpose.msra.mxu0 %v237
    %243 = vmatprep.subr.mxu0 0.0
    %244 = vmatpush1.xpose.msra.mxu0 %v239
    %245 = vmatprep.subr.mxu0 0.0
    %246 = vmatpush1.xpose.msra.mxu0 0.0
    %247 = vmatprep.subr.mxu0 0.0
    %248 = vmatpush1.xpose.msra.mxu0 0.0
    %249 = vmatprep.subr.mxu0 0.0
    %250 = vmatpush1.xpose.msra.mxu0 0.0
    %251 = vmatprep.subr.mxu0 0.0
    %252 = vmatpush1.xpose.msra.mxu0 0.0
    %253 = vmatprep.subr.mxu0 0.0
    %254 = vmatpush1.xpose.msra.mxu0 0.0
    %255 = vmatprep.subr.mxu0 0.0
    %256 = vmatpush1.xpose.msra.mxu0 0.0
    %257 = vmatprep.subr.mxu0 0.0
    %258 = vmatpush1.xpose.msra.mxu0 0.0
    %259 = vmatprep.subr.mxu0 0.0
    %260 = vmatpush1.xpose.msra.mxu0 0.0
    %261 = vmatprep.subr.mxu0 0.0
    %262 = vmatpush1.xpose.msra.mxu0 0.0
    %263 = vmatprep.subr.mxu0 0.0
    %264 = vmatpush1.xpose.msra.mxu0 0.0
    %265 = vmatprep.subr.mxu0 0.0
    %266 = vmatpush1.xpose.msra.mxu0 0.0
    %267 = vmatprep.subr.mxu0 0.0
    %268 = vmatpush1.xpose.msra.mxu0 0.0
    %269 = vmatprep.subr.mxu0 0.0
    %270 = vmatpush1.xpose.msra.mxu0 0.0
    %271 = vmatprep.subr.mxu0 0.0
    %272 = vmatpush1.xpose.msra.mxu0 0.0
    %273 = vmatprep.subr.mxu0 0.0
    %274 = vmatpush1.xpose.msra.mxu0 0.0
    %275 = vmatprep.subr.mxu0 0.0
    %276 = vmatpush1.xpose.msra.mxu0 0.0
    %277 = vmatprep.subr.mxu0 0.0
    %278 = vmatpush1.xpose.msra.mxu0 0.0
    %279 = vmatprep.subr.mxu0 0.0
    %280 = vmatpush1.xpose.msra.mxu0 0.0
    %281 = vmatprep.subr.mxu0 0.0
    %282 = vmatpush1.xpose.msra.mxu0 0.0
    %283 = vmatprep.subr.mxu0 0.0
    %284 = vmatpush1.xpose.msra.mxu0 0.0
    %285 = vmatprep.subr.mxu0 0.0
    %286 = vmatpush1.xpose.msra.mxu0 0.0
    %287 = vmatprep.subr.mxu0 0.0
    %288 = vmatpush1.xpose.msra.mxu0 0.0
    %289 = vmatprep.subr.mxu0 0.0
    %290 = vmatpush1.xpose.msra.mxu0 0.0
    %291 = vmatprep.subr.mxu0 0.0
    %292 = vmatpush1.xpose.msra.mxu0 0.0
    %293 = vmatprep.subr.mxu0 0.0
    %294 = vmatpush1.xpose.msra.mxu0 0.0
    %295 = vmatprep.subr.mxu0 0.0
    %296 = vmatpush1.xpose.msra.mxu0 0.0
    %297 = vmatprep.subr.mxu0 0.0
    %298 = vmatpush1.xpose.msra.mxu0 0.0
    %299 = vmatprep.subr.mxu0 0.0
    %300 = vmatpush1.xpose.msra.mxu0 0.0
    %301 = vmatprep.subr.mxu0 0.0
    %302 = vmatpush1.xpose.msra.mxu0 0.0
    %303 = vmatprep.subr.mxu0 0.0
    %304 = vmatpush1.xpose.msra.mxu0 0.0
    %305 = vmatprep.mubr.f32.mxu0 0.0
    %306 = vmatmul.mubr.f32.gmra.mrb[0].mxu0 %v233
    %v307 = vpop.f32.mrb[0].mxu0
    %v308 = vadd.f32 0.0, %v307
    %v309 = vpop.f32.mrb[0].mxu0
    %310 = vmatprep.mubr.f32.mxu0 0.0
    %311 = vmatmul.mubr.f32.gmra.mrb[0].mxu0 %v235
    %v312 = vpop.f32.mrb[0].mxu0
    %v313 = vadd.f32 0.0, %v312
    %v314 = vpop.f32.mrb[0].mxu0
    %315 = vdwg.mxu0
    %v316 = vmul.f32 %v308, 0.25
    %v317 = vmul.f32 %v313, 0.25
    %v318 = vadd.f32 %v316, %v81
    %v319 = vadd.f32 %v317, %v82
    %v320 = vsel %vm232, %v318, -inf
    %321 = vmax.xlane.f32.xlu0 %v320
    %v322 = vpop.xlane.xlu0 %321
    %v323 = vsel %vm232, %v319, -inf
    %324 = vmax.xlane.f32.xlu0 %v323
    %v325 = vpop.xlane.xlu0 %324
    %v326 = vsub.f32 %v318, %v322
    %v327 = vsub.f32 %v319, %v325
    %v328 = vmul.f32 %v326, 1.442695
    %v329 = vpow.pop %v328
    %v330 = vmul.f32 %v327, 1.442695
    %v331 = vpow.pop %v330
    %v332 = vsel %vm232, %v329, 0.0
    %333 = vadd.xlane.f32.xlu0 %v332
    %v334 = vpop.xlane.xlu0 %333
    %v335 = vsel %vm232, %v331, 0.0
    %336 = vadd.xlane.f32.xlu0 %v335
    %v337 = vpop.xlane.xlu0 %336
    %v338 = vrcp.pop %v334
    %v339 = vrcp.pop %v337
    %v340 = vmul.f32 %v329, %v338
    %v341 = vmul.f32 %v331, %v339
    %342 = vrot.lane.b32.xlu0 %v218, 64
    %v343 = vpop.permute.xlu0 %342
    %344 = vrot.lane.b32.xlu0 %v223, 64
    %v345 = vpop.permute.xlu0 %344
    %v349 = vsel %vm232, %v340, 0
    %v352 = vsel %vm232, %v341, 0
    %354 = vmatprep.subr.mxu0 0.0
    %355 = vmatpush1.msra.mxu0 %v343
    %356 = vmatprep.subr.mxu0 0.0
    %357 = vmatpush1.msra.mxu0 %v345
    %358 = vmatprep.subr.mxu0 0.0
    %359 = vmatpush1.msra.mxu0 0.0
    %360 = vmatprep.subr.mxu0 0.0
    %361 = vmatpush1.msra.mxu0 0.0
    %362 = vmatprep.subr.mxu0 0.0
    %363 = vmatpush1.msra.mxu0 0.0
    %364 = vmatprep.subr.mxu0 0.0
    %365 = vmatpush1.msra.mxu0 0.0
    %366 = vmatprep.subr.mxu0 0.0
    %367 = vmatpush1.msra.mxu0 0.0
    %368 = vmatprep.subr.mxu0 0.0
    %369 = vmatpush1.msra.mxu0 0.0
    %370 = vmatprep.subr.mxu0 0.0
    %371 = vmatpush1.msra.mxu0 0.0
    %372 = vmatprep.subr.mxu0 0.0
    %373 = vmatpush1.msra.mxu0 0.0
    %374 = vmatprep.subr.mxu0 0.0
    %375 = vmatpush1.msra.mxu0 0.0
    %376 = vmatprep.subr.mxu0 0.0
    %377 = vmatpush1.msra.mxu0 0.0
    %378 = vmatprep.subr.mxu0 0.0
    %379 = vmatpush1.msra.mxu0 0.0
    %380 = vmatprep.subr.mxu0 0.0
    %381 = vmatpush1.msra.mxu0 0.0
    %382 = vmatprep.subr.mxu0 0.0
    %383 = vmatpush1.msra.mxu0 0.0
    %384 = vmatprep.subr.mxu0 0.0
    %385 = vmatpush1.msra.mxu0 0.0
    %386 = vmatprep.subr.mxu0 0.0
    %387 = vmatpush1.msra.mxu0 0.0
    %388 = vmatprep.subr.mxu0 0.0
    %389 = vmatpush1.msra.mxu0 0.0
    %390 = vmatprep.subr.mxu0 0.0
    %391 = vmatpush1.msra.mxu0 0.0
    %392 = vmatprep.subr.mxu0 0.0
    %393 = vmatpush1.msra.mxu0 0.0
    %394 = vmatprep.subr.mxu0 0.0
    %395 = vmatpush1.msra.mxu0 0.0
    %396 = vmatprep.subr.mxu0 0.0
    %397 = vmatpush1.msra.mxu0 0.0
    %398 = vmatprep.subr.mxu0 0.0
    %399 = vmatpush1.msra.mxu0 0.0
    %400 = vmatprep.subr.mxu0 0.0
    %401 = vmatpush1.msra.mxu0 0.0
    %402 = vmatprep.subr.mxu0 0.0
    %403 = vmatpush1.msra.mxu0 0.0
    %404 = vmatprep.subr.mxu0 0.0
    %405 = vmatpush1.msra.mxu0 0.0
    %406 = vmatprep.subr.mxu0 0.0
    %407 = vmatpush1.msra.mxu0 0.0
    %408 = vmatprep.subr.mxu0 0.0
    %409 = vmatpush1.msra.mxu0 0.0
    %410 = vmatprep.subr.mxu0 0.0
    %411 = vmatpush1.msra.mxu0 0.0
    %412 = vmatprep.subr.mxu0 0.0
    %413 = vmatpush1.msra.mxu0 0.0
    %414 = vmatprep.subr.mxu0 0.0
    %415 = vmatpush1.msra.mxu0 0.0
    %416 = vmatprep.subr.mxu0 0.0
    %417 = vmatpush1.msra.mxu0 0.0
    %418 = vmatprep.mubr.f32.mxu0 0.0
    %419 = vmatmul.mubr.f32.gmra.mrb[0].mxu0 %v349
    %v420 = vpop.f32.mrb[0].mxu0
    %v421 = vadd.f32 0.0, %v420
    %v422 = vpop.f32.mrb[0].mxu0
    %423 = vmatprep.mubr.f32.mxu0 0.0
    %424 = vmatmul.mubr.f32.gmra.mrb[0].mxu0 %v352
    %v425 = vpop.f32.mrb[0].mxu0
    %v426 = vadd.f32 0.0, %v425
    %v427 = vpop.f32.mrb[0].mxu0
    %428 = vdwg.mxu0
    %429 = vrot.lane.b32.xlu0 %v218, 112
    %v430 = vpop.permute.xlu0 %429
    %431 = vrot.lane.b32.xlu0 %v223, 112
    %v432 = vpop.permute.xlu0 %431
    %433 = vrot.lane.b32.xlu0 %v218, 80
    %v434 = vpop.permute.xlu0 %433
    %435 = vrot.lane.b32.xlu0 %v223, 80
    %v436 = vpop.permute.xlu0 %435
    %v437 = vsel %vm232, %v430, 0
    %v439 = vsel %vm232, %v432, 0
    %v441 = vsel %vm232, %v434, 0
    %v443 = vsel %vm232, %v436, 0
    %445 = vmatprep.subr.mxu0 0.0
    %446 = vmatpush1.xpose.msra.mxu0 %v441
    %447 = vmatprep.subr.mxu0 0.0
    %448 = vmatpush1.xpose.msra.mxu0 %v443
    %449 = vmatprep.subr.mxu0 0.0
    %450 = vmatpush1.xpose.msra.mxu0 0.0
    %451 = vmatprep.subr.mxu0 0.0
    %452 = vmatpush1.xpose.msra.mxu0 0.0
    %453 = vmatprep.subr.mxu0 0.0
    %454 = vmatpush1.xpose.msra.mxu0 0.0
    %455 = vmatprep.subr.mxu0 0.0
    %456 = vmatpush1.xpose.msra.mxu0 0.0
    %457 = vmatprep.subr.mxu0 0.0
    %458 = vmatpush1.xpose.msra.mxu0 0.0
    %459 = vmatprep.subr.mxu0 0.0
    %460 = vmatpush1.xpose.msra.mxu0 0.0
    %461 = vmatprep.subr.mxu0 0.0
    %462 = vmatpush1.xpose.msra.mxu0 0.0
    %463 = vmatprep.subr.mxu0 0.0
    %464 = vmatpush1.xpose.msra.mxu0 0.0
    %465 = vmatprep.subr.mxu0 0.0
    %466 = vmatpush1.xpose.msra.mxu0 0.0
    %467 = vmatprep.subr.mxu0 0.0
    %468 = vmatpush1.xpose.msra.mxu0 0.0
    %469 = vmatprep.subr.mxu0 0.0
    %470 = vmatpush1.xpose.msra.mxu0 0.0
    %471 = vmatprep.subr.mxu0 0.0
    %472 = vmatpush1.xpose.msra.mxu0 0.0
    %473 = vmatprep.subr.mxu0 0.0
    %474 = vmatpush1.xpose.msra.mxu0 0.0
    %475 = vmatprep.subr.mxu0 0.0
    %476 = vmatpush1.xpose.msra.mxu0 0.0
    %477 = vmatprep.subr.mxu0 0.0
    %478 = vmatpush1.xpose.msra.mxu0 0.0
    %479 = vmatprep.subr.mxu0 0.0
    %480 = vmatpush1.xpose.msra.mxu0 0.0
    %481 = vmatprep.subr.mxu0 0.0
    %482 = vmatpush1.xpose.msra.mxu0 0.0
    %483 = vmatprep.subr.mxu0 0.0
    %484 = vmatpush1.xpose.msra.mxu0 0.0
    %485 = vmatprep.subr.mxu0 0.0
    %486 = vmatpush1.xpose.msra.mxu0 0.0
    %487 = vmatprep.subr.mxu0 0.0
    %488 = vmatpush1.xpose.msra.mxu0 0.0
    %489 = vmatprep.subr.mxu0 0.0
    %490 = vmatpush1.xpose.msra.mxu0 0.0
    %491 = vmatprep.subr.mxu0 0.0
    %492 = vmatpush1.xpose.msra.mxu0 0.0
    %493 = vmatprep.subr.mxu0 0.0
    %494 = vmatpush1.xpose.msra.mxu0 0.0
    %495 = vmatprep.subr.mxu0 0.0
    %496 = vmatpush1.xpose.msra.mxu0 0.0
    %497 = vmatprep.subr.mxu0 0.0
    %498 = vmatpush1.xpose.msra.mxu0 0.0
    %499 = vmatprep.subr.mxu0 0.0
    %500 = vmatpush1.xpose.msra.mxu0 0.0
    %501 = vmatprep.subr.mxu0 0.0
    %502 = vmatpush1.xpose.msra.mxu0 0.0
    %503 = vmatprep.subr.mxu0 0.0
    %504 = vmatpush1.xpose.msra.mxu0 0.0
    %505 = vmatprep.subr.mxu0 0.0
    %506 = vmatpush1.xpose.msra.mxu0 0.0
    %507 = vmatprep.subr.mxu0 0.0
    %508 = vmatpush1.xpose.msra.mxu0 0.0
    %509 = vmatprep.mubr.f32.mxu0 0.0
    %510 = vmatmul.mubr.f32.gmra.mrb[0].mxu0 %v437
    %v511 = vpop.f32.mrb[0].mxu0
    %v512 = vadd.f32 0.0, %v511
    %v513 = vpop.f32.mrb[0].mxu0
    %514 = vmatprep.mubr.f32.mxu0 0.0
    %515 = vmatmul.mubr.f32.gmra.mrb[0].mxu0 %v439
    %v516 = vpop.f32.mrb[0].mxu0
    %v517 = vadd.f32 0.0, %v516
    %v518 = vpop.f32.mrb[0].mxu0
    %519 = vdwg.mxu0
    %v520 = vmul.f32 %v512, 0.25
    %v521 = vmul.f32 %v517, 0.25
    %v522 = vadd.f32 %v520, %v81
    %v523 = vadd.f32 %v521, %v82
    %v524 = vsel %vm232, %v522, -inf
    %525 = vmax.xlane.f32.xlu0 %v524
    %v526 = vpop.xlane.xlu0 %525
    %v527 = vsel %vm232, %v523, -inf
    %528 = vmax.xlane.f32.xlu0 %v527
    %v529 = vpop.xlane.xlu0 %528
    %v530 = vsub.f32 %v522, %v526
    %v531 = vsub.f32 %v523, %v529
    %v532 = vmul.f32 %v530, 1.442695
    %v533 = vpow.pop %v532
    %v534 = vmul.f32 %v531, 1.442695
    %v535 = vpow.pop %v534
    %v536 = vsel %vm232, %v533, 0.0
    %537 = vadd.xlane.f32.xlu0 %v536
    %v538 = vpop.xlane.xlu0 %537
    %v539 = vsel %vm232, %v535, 0.0
    %540 = vadd.xlane.f32.xlu0 %v539
    %v541 = vpop.xlane.xlu0 %540
    %v542 = vrcp.pop %v538
    %v543 = vrcp.pop %v541
    %v544 = vmul.f32 %v533, %v542
    %v545 = vmul.f32 %v535, %v543
    %546 = vrot.lane.b32.xlu0 %v218, 48
    %v547 = vpop.permute.xlu0 %546
    %548 = vrot.lane.b32.xlu0 %v223, 48
    %v549 = vpop.permute.xlu0 %548
    %v553 = vsel %vm232, %v544, 0
    %v556 = vsel %vm232, %v545, 0
    %558 = vmatprep.subr.mxu0 0.0
    %559 = vmatpush1.msra.mxu0 %v547
    %560 = vmatprep.subr.mxu0 0.0
    %561 = vmatpush1.msra.mxu0 %v549
    %562 = vmatprep.subr.mxu0 0.0
    %563 = vmatpush1.msra.mxu0 0.0
    %564 = vmatprep.subr.mxu0 0.0
    %565 = vmatpush1.msra.mxu0 0.0
    %566 = vmatprep.subr.mxu0 0.0
    %567 = vmatpush1.msra.mxu0 0.0
    %568 = vmatprep.subr.mxu0 0.0
    %569 = vmatpush1.msra.mxu0 0.0
    %570 = vmatprep.subr.mxu0 0.0
    %571 = vmatpush1.msra.mxu0 0.0
    %572 = vmatprep.subr.mxu0 0.0
    %573 = vmatpush1.msra.mxu0 0.0
    %574 = vmatprep.subr.mxu0 0.0
    %575 = vmatpush1.msra.mxu0 0.0
    %576 = vmatprep.subr.mxu0 0.0
    %577 = vmatpush1.msra.mxu0 0.0
    %578 = vmatprep.subr.mxu0 0.0
    %579 = vmatpush1.msra.mxu0 0.0
    %580 = vmatprep.subr.mxu0 0.0
    %581 = vmatpush1.msra.mxu0 0.0
    %582 = vmatprep.subr.mxu0 0.0
    %583 = vmatpush1.msra.mxu0 0.0
    %584 = vmatprep.subr.mxu0 0.0
    %585 = vmatpush1.msra.mxu0 0.0
    %586 = vmatprep.subr.mxu0 0.0
    %587 = vmatpush1.msra.mxu0 0.0
    %588 = vmatprep.subr.mxu0 0.0
    %589 = vmatpush1.msra.mxu0 0.0
    %590 = vmatprep.subr.mxu0 0.0
    %591 = vmatpush1.msra.mxu0 0.0
    %592 = vmatprep.subr.mxu0 0.0
    %593 = vmatpush1.msra.mxu0 0.0
    %594 = vmatprep.subr.mxu0 0.0
    %595 = vmatpush1.msra.mxu0 0.0
    %596 = vmatprep.subr.mxu0 0.0
    %597 = vmatpush1.msra.mxu0 0.0
    %598 = vmatprep.subr.mxu0 0.0
    %599 = vmatpush1.msra.mxu0 0.0
    %600 = vmatprep.subr.mxu0 0.0
    %601 = vmatpush1.msra.mxu0 0.0
    %602 = vmatprep.subr.mxu0 0.0
    %603 = vmatpush1.msra.mxu0 0.0
    %604 = vmatprep.subr.mxu0 0.0
    %605 = vmatpush1.msra.mxu0 0.0
    %606 = vmatprep.subr.mxu0 0.0
    %607 = vmatpush1.msra.mxu0 0.0
    %608 = vmatprep.subr.mxu0 0.0
    %609 = vmatpush1.msra.mxu0 0.0
    %610 = vmatprep.subr.mxu0 0.0
    %611 = vmatpush1.msra.mxu0 0.0
    %612 = vmatprep.subr.mxu0 0.0
    %613 = vmatpush1.msra.mxu0 0.0
    %614 = vmatprep.subr.mxu0 0.0
    %615 = vmatpush1.msra.mxu0 0.0
    %616 = vmatprep.subr.mxu0 0.0
    %617 = vmatpush1.msra.mxu0 0.0
    %618 = vmatprep.subr.mxu0 0.0
    %619 = vmatpush1.msra.mxu0 0.0
    %620 = vmatprep.subr.mxu0 0.0
    %621 = vmatpush1.msra.mxu0 0.0
    %622 = vmatprep.mubr.f32.mxu0 0.0
    %623 = vmatmul.mubr.f32.gmra.mrb[0].mxu0 %v553
    %v624 = vpop.f32.mrb[0].mxu0
    %v625 = vadd.f32 0.0, %v624
    %v626 = vpop.f32.mrb[0].mxu0
    %627 = vmatprep.mubr.f32.mxu0 0.0
    %628 = vmatmul.mubr.f32.gmra.mrb[0].mxu0 %v556
    %v629 = vpop.f32.mrb[0].mxu0
    %v630 = vadd.f32 0.0, %v629
    %v631 = vpop.f32.mrb[0].mxu0
    %632 = vdwg.mxu0
    %635 = vrot.lane.b32.xlu0 %v625, 16
    %v636 = vpop.permute.xlu0 %635
    %637 = vrot.lane.b32.xlu0 %v630, 16
    %v638 = vpop.permute.xlu0 %637
    %v641 = vsel %vm232, %v421, %v636
    %v642 = vsel %vm232, %v426, %v638
    %v643 = vlaneseq
    %v644 = vshrl.u32 %v643, 7
    %v645 = vsub.s32 1, %v644
    %v646 = vrot.slane %v140, %v645
    %651 = vrot.lane.b32.xlu0 %v128, 32
    %v652 = vpop.permute.xlu0 %651
    %653 = vrot.lane.b32.xlu0 %v129, 32
    %v654 = vpop.permute.xlu0 %653
    %655 = vrot.lane.b32.xlu0 %v130, 32
    %v656 = vpop.permute.xlu0 %655
    %657 = vrot.lane.b32.xlu0 %v131, 32
    %v658 = vpop.permute.xlu0 %657
    %v664 = vsel %vm84, %v641, 0
    %v667 = vsel %vm84, %v642, 0
    %669 = vmatprep.subr.mxu0 0.0
    %670 = vmatpush1.msra.mxu0 %v652
    %671 = vmatprep.subr.mxu0 0.0
    %672 = vmatpush1.msra.mxu0 %v654
    %673 = vmatprep.subr.mxu0 0.0
    %674 = vmatpush1.msra.mxu0 %v656
    %675 = vmatprep.subr.mxu0 0.0
    %676 = vmatpush1.msra.mxu0 %v658
    %677 = vmatprep.subr.mxu0 0.0
    %678 = vmatpush1.msra.mxu0 0.0
    %679 = vmatprep.subr.mxu0 0.0
    %680 = vmatpush1.msra.mxu0 0.0
    %681 = vmatprep.subr.mxu0 0.0
    %682 = vmatpush1.msra.mxu0 0.0
    %683 = vmatprep.subr.mxu0 0.0
    %684 = vmatpush1.msra.mxu0 0.0
    %685 = vmatprep.subr.mxu0 0.0
    %686 = vmatpush1.msra.mxu0 0.0
    %687 = vmatprep.subr.mxu0 0.0
    %688 = vmatpush1.msra.mxu0 0.0
    %689 = vmatprep.subr.mxu0 0.0
    %690 = vmatpush1.msra.mxu0 0.0
    %691 = vmatprep.subr.mxu0 0.0
    %692 = vmatpush1.msra.mxu0 0.0
    %693 = vmatprep.subr.mxu0 0.0
    %694 = vmatpush1.msra.mxu0 0.0
    %695 = vmatprep.subr.mxu0 0.0
    %696 = vmatpush1.msra.mxu0 0.0
    %697 = vmatprep.subr.mxu0 0.0
    %698 = vmatpush1.msra.mxu0 0.0
    %699 = vmatprep.subr.mxu0 0.0
    %700 = vmatpush1.msra.mxu0 0.0
    %701 = vmatprep.subr.mxu0 0.0
    %702 = vmatpush1.msra.mxu0 0.0
    %703 = vmatprep.subr.mxu0 0.0
    %704 = vmatpush1.msra.mxu0 0.0
    %705 = vmatprep.subr.mxu0 0.0
    %706 = vmatpush1.msra.mxu0 0.0
    %707 = vmatprep.subr.mxu0 0.0
    %708 = vmatpush1.msra.mxu0 0.0
    %709 = vmatprep.subr.mxu0 0.0
    %710 = vmatpush1.msra.mxu0 0.0
    %711 = vmatprep.subr.mxu0 0.0
    %712 = vmatpush1.msra.mxu0 0.0
    %713 = vmatprep.subr.mxu0 0.0
    %714 = vmatpush1.msra.mxu0 0.0
    %715 = vmatprep.subr.mxu0 0.0
    %716 = vmatpush1.msra.mxu0 0.0
    %717 = vmatprep.subr.mxu0 0.0
    %718 = vmatpush1.msra.mxu0 0.0
    %719 = vmatprep.subr.mxu0 0.0
    %720 = vmatpush1.msra.mxu0 0.0
    %721 = vmatprep.subr.mxu0 0.0
    %722 = vmatpush1.msra.mxu0 0.0
    %723 = vmatprep.subr.mxu0 0.0
    %724 = vmatpush1.msra.mxu0 0.0
    %725 = vmatprep.subr.mxu0 0.0
    %726 = vmatpush1.msra.mxu0 0.0
    %727 = vmatprep.subr.mxu0 0.0
    %728 = vmatpush1.msra.mxu0 0.0
    %729 = vmatprep.subr.mxu0 0.0
    %730 = vmatpush1.msra.mxu0 0.0
    %731 = vmatprep.subr.mxu0 0.0
    %732 = vmatpush1.msra.mxu0 0.0
    %733 = vmatprep.mubr.f32.mxu0 0.0
    %734 = vmatmul.mubr.f32.gmra.mrb[0].mxu0 %v664
    %v735 = vpop.f32.mrb[0].mxu0
    %v736 = vadd.f32 %v646, %v735
    %v737 = vpop.f32.mrb[0].mxu0
    %738 = vmatprep.mubr.f32.mxu0 0.0
    %739 = vmatmul.mubr.f32.gmra.mrb[0].mxu0 %v667
    %v740 = vpop.f32.mrb[0].mxu0
    %v741 = vadd.f32 %v646, %v740
    %v742 = vpop.f32.mrb[0].mxu0
    %743 = vdwg.mxu0
    %v744 = vadd.f32 %v126, %v736
    %v745 = vadd.f32 %v127, %v741
    %v746 = vsel %vm84, %v744, 0.0
    %747 = vadd.xlane.f32.xlu0 %v746
    %v748 = vpop.xlane.xlu0 %747
    %v749 = vsel %vm84, %v745, 0.0
    %750 = vadd.xlane.f32.xlu0 %v749
    %v751 = vpop.xlane.xlu0 %750
    %v752 = vmul.f32 %v748, %v91
    %v753 = vmul.f32 %v751, %v91
    %v754 = vmul.f32 %v744, %v744
    %v755 = vmul.f32 %v745, %v745
    %v756 = vsel %vm84, %v754, 0.0
    %757 = vadd.xlane.f32.xlu0 %v756
    %v758 = vpop.xlane.xlu0 %757
    %v759 = vsel %vm84, %v755, 0.0
    %760 = vadd.xlane.f32.xlu0 %v759
    %v761 = vpop.xlane.xlu0 %760
    %v762 = vmul.f32 %v758, %v91
    %v763 = vmul.f32 %v761, %v91
    %v764 = vsub.f32 %v744, %v752
    %v765 = vsub.f32 %v745, %v753
    %v766 = vmul.f32 %v752, %v752
    %v767 = vmul.f32 %v753, %v753
    %v768 = vsub.f32 %v762, %v766
    %v769 = vsub.f32 %v763, %v767
    %v770 = vadd.f32 %v768, 1e-12
    %v771 = vadd.f32 %v769, 1e-12
    %v772 = vrsqrt.pop %v770
    %v773 = vrsqrt.pop %v771
    %v774 = vmul.f32 %v764, %v772
    %v775 = vmul.f32 %v765, %v773
    %v776 = vlaneseq
    %v777 = vshrl.u32 %v776, 7
    %v778 = vsub.s32 2, %v777
    %v779 = vrot.slane %v140, %v778
    %v780 = vmul.f32 %v774, %v779
    %v781 = vmul.f32 %v775, %v779
    %v782 = vlaneseq
    %v783 = vshrl.u32 %v782, 7
    %v784 = vsub.s32 3, %v783
    %v785 = vrot.slane %v140, %v784
    %v786 = vadd.f32 %v780, %v785
    %v787 = vadd.f32 %v781, %v785
    %v788 = vlaneseq
    %v789 = vshrl.u32 %v788, 7
    %v790 = vsub.s32 4, %v789
    %v791 = vrot.slane %v140, %v790
    %v793 = vsel %vm84, %v786, 0
    %v796 = vsel %vm84, %v787, 0
    %798 = vmatprep.subr.mxu0 0.0
    %799 = vmatpush1.msra.mxu0 %v132
    %800 = vmatprep.subr.mxu0 0.0
    %801 = vmatpush1.msra.mxu0 %v133
    %802 = vmatprep.subr.mxu0 0.0
    %803 = vmatpush1.msra.mxu0 %v134
    %804 = vmatprep.subr.mxu0 0.0
    %805 = vmatpush1.msra.mxu0 %v135
    %806 = vmatprep.subr.mxu0 0.0
    %807 = vmatpush1.msra.mxu0 0.0
    %808 = vmatprep.subr.mxu0 0.0
    %809 = vmatpush1.msra.mxu0 0.0
    %810 = vmatprep.subr.mxu0 0.0
    %811 = vmatpush1.msra.mxu0 0.0
    %812 = vmatprep.subr.mxu0 0.0
    %813 = vmatpush1.msra.mxu0 0.0
    %814 = vmatprep.subr.mxu0 0.0
    %815 = vmatpush1.msra.mxu0 0.0
    %816 = vmatprep.subr.mxu0 0.0
    %817 = vmatpush1.msra.mxu0 0.0
    %818 = vmatprep.subr.mxu0 0.0
    %819 = vmatpush1.msra.mxu0 0.0
    %820 = vmatprep.subr.mxu0 0.0
    %821 = vmatpush1.msra.mxu0 0.0
    %822 = vmatprep.subr.mxu0 0.0
    %823 = vmatpush1.msra.mxu0 0.0
    %824 = vmatprep.subr.mxu0 0.0
    %825 = vmatpush1.msra.mxu0 0.0
    %826 = vmatprep.subr.mxu0 0.0
    %827 = vmatpush1.msra.mxu0 0.0
    %828 = vmatprep.subr.mxu0 0.0
    %829 = vmatpush1.msra.mxu0 0.0
    %830 = vmatprep.subr.mxu0 0.0
    %831 = vmatpush1.msra.mxu0 0.0
    %832 = vmatprep.subr.mxu0 0.0
    %833 = vmatpush1.msra.mxu0 0.0
    %834 = vmatprep.subr.mxu0 0.0
    %835 = vmatpush1.msra.mxu0 0.0
    %836 = vmatprep.subr.mxu0 0.0
    %837 = vmatpush1.msra.mxu0 0.0
    %838 = vmatprep.subr.mxu0 0.0
    %839 = vmatpush1.msra.mxu0 0.0
    %840 = vmatprep.subr.mxu0 0.0
    %841 = vmatpush1.msra.mxu0 0.0
    %842 = vmatprep.subr.mxu0 0.0
    %843 = vmatpush1.msra.mxu0 0.0
    %844 = vmatprep.subr.mxu0 0.0
    %845 = vmatpush1.msra.mxu0 0.0
    %846 = vmatprep.subr.mxu0 0.0
    %847 = vmatpush1.msra.mxu0 0.0
    %848 = vmatprep.subr.mxu0 0.0
    %849 = vmatpush1.msra.mxu0 0.0
    %850 = vmatprep.subr.mxu0 0.0
    %851 = vmatpush1.msra.mxu0 0.0
    %852 = vmatprep.subr.mxu0 0.0
    %853 = vmatpush1.msra.mxu0 0.0
    %854 = vmatprep.subr.mxu0 0.0
    %855 = vmatpush1.msra.mxu0 0.0
    %856 = vmatprep.subr.mxu0 0.0
    %857 = vmatpush1.msra.mxu0 0.0
    %858 = vmatprep.subr.mxu0 0.0
    %859 = vmatpush1.msra.mxu0 0.0
    %860 = vmatprep.subr.mxu0 0.0
    %861 = vmatpush1.msra.mxu0 0.0
    %862 = vmatprep.mubr.f32.mxu0 0.0
    %863 = vmatmul.mubr.f32.gmra.mrb[0].mxu0 %v793
    %v864 = vpop.f32.mrb[0].mxu0
    %v865 = vadd.f32 %v791, %v864
    %v866 = vpop.f32.mrb[0].mxu0
    %867 = vmatprep.mubr.f32.mxu0 0.0
    %868 = vmatmul.mubr.f32.gmra.mrb[0].mxu0 %v796
    %v869 = vpop.f32.mrb[0].mxu0
    %v870 = vadd.f32 %v791, %v869
    %v871 = vpop.f32.mrb[0].mxu0
    %872 = vdwg.mxu0
    %v873 = vmul.f32 %v865, %v865
    %v874 = vmul.f32 %v870, %v870
    %v875 = vmul.f32 %v865, %v873
    %v876 = vmul.f32 %v870, %v874
    %v877 = vmul.f32 %v875, 0.044715
    %v878 = vmul.f32 %v876, 0.044715
    %v879 = vadd.f32 %v865, %v877
    %v880 = vadd.f32 %v870, %v878
    %v881 = vmul.f32 %v879, 0.7978846
    %v882 = vmul.f32 %v880, 0.7978846
    %v883 = vtanh.pop %v881
    %v884 = vtanh.pop %v882
    %v885 = vadd.f32 %v883, 1.0
    %v886 = vadd.f32 %v884, 1.0
    %v887 = vmul.f32 %v885, 0.5
    %v888 = vmul.f32 %v886, 0.5
    %v889 = vmul.f32 %v865, %v887
    %v890 = vmul.f32 %v870, %v888
    %v891 = vlaneseq
    %v892 = vshrl.u32 %v891, 7
    %v893 = vsub.s32 5, %v892
    %v894 = vrot.slane %v140, %v893
    %vm895 = vcmask 523264
    %v897 = vsel %vm895, %v889, 0
    %v900 = vsel %vm895, %v890, 0
    %v903 = vsel %vm895, %v136, 0
    %v906 = vsel %vm895, %v137, 0
    %v909 = vsel %vm895, %v138, 0
    %v912 = vsel %vm895, %v139, 0
    %914 = vmatprep.subr.mxu0 0.0
    %915 = vmatpush1.xpose.msra.mxu0 %v903
    %916 = vmatprep.subr.mxu0 0.0
    %917 = vmatpush1.xpose.msra.mxu0 %v906
    %918 = vmatprep.subr.mxu0 0.0
    %919 = vmatpush1.xpose.msra.mxu0 %v909
    %920 = vmatprep.subr.mxu0 0.0
    %921 = vmatpush1.xpose.msra.mxu0 %v912
    %922 = vmatprep.subr.mxu0 0.0
    %923 = vmatpush1.xpose.msra.mxu0 0.0
    %924 = vmatprep.subr.mxu0 0.0
    %925 = vmatpush1.xpose.msra.mxu0 0.0
    %926 = vmatprep.subr.mxu0 0.0
    %927 = vmatpush1.xpose.msra.mxu0 0.0
    %928 = vmatprep.subr.mxu0 0.0
    %929 = vmatpush1.xpose.msra.mxu0 0.0
    %930 = vmatprep.subr.mxu0 0.0
    %931 = vmatpush1.xpose.msra.mxu0 0.0
    %932 = vmatprep.subr.mxu0 0.0
    %933 = vmatpush1.xpose.msra.mxu0 0.0
    %934 = vmatprep.subr.mxu0 0.0
    %935 = vmatpush1.xpose.msra.mxu0 0.0
    %936 = vmatprep.subr.mxu0 0.0
    %937 = vmatpush1.xpose.msra.mxu0 0.0
    %938 = vmatprep.subr.mxu0 0.0
    %939 = vmatpush1.xpose.msra.mxu0 0.0
    %940 = vmatprep.subr.mxu0 0.0
    %941 = vmatpush1.xpose.msra.mxu0 0.0
    %942 = vmatprep.subr.mxu0 0.0
    %943 = vmatpush1.xpose.msra.mxu0 0.0
    %944 = vmatprep.subr.mxu0 0.0
    %945 = vmatpush1.xpose.msra.mxu0 0.0
    %946 = vmatprep.subr.mxu0 0.0
    %947 = vmatpush1.xpose.msra.mxu0 0.0
    %948 = vmatprep.subr.mxu0 0.0
    %949 = vmatpush1.xpose.msra.mxu0 0.0
    %950 = vmatprep.subr.mxu0 0.0
    %951 = vmatpush1.xpose.msra.mxu0 0.0
    %952 = vmatprep.subr.mxu0 0.0
    %953 = vmatpush1.xpose.msra.mxu0 0.0
    %954 = vmatprep.subr.mxu0 0.0
    %955 = vmatpush1.xpose.msra.mxu0 0.0
    %956 = vmatprep.subr.mxu0 0.0
    %957 = vmatpush1.xpose.msra.mxu0 0.0
    %958 = vmatprep.subr.mxu0 0.0
    %959 = vmatpush1.xpose.msra.mxu0 0.0
    %960 = vmatprep.subr.mxu0 0.0
    %961 = vmatpush1.xpose.msra.mxu0 0.0
    %962 = vmatprep.subr.mxu0 0.0
    %963 = vmatpush1.xpose.msra.mxu0 0.0
    %964 = vmatprep.subr.mxu0 0.0
    %965 = vmatpush1.xpose.msra.mxu0 0.0
    %966 = vmatprep.subr.mxu0 0.0
    %967 = vmatpush1.xpose.msra.mxu0 0.0
    %968 = vmatprep.subr.mxu0 0.0
    %969 = vmatpush1.xpose.msra.mxu0 0.0
    %970 = vmatprep.subr.mxu0 0.0
    %971 = vmatpush1.xpose.msra.mxu0 0.0
    %972 = vmatprep.subr.mxu0 0.0
    %973 = vmatpush1.xpose.msra.mxu0 0.0
    %974 = vmatprep.subr.mxu0 0.0
    %975 = vmatpush1.xpose.msra.mxu0 0.0
    %976 = vmatprep.subr.mxu0 0.0
    %977 = vmatpush1.xpose.msra.mxu0 0.0
    %978 = vmatprep.mubr.f32.mxu0 0.0
    %979 = vmatmul.mubr.f32.gmra.mrb[0].mxu0 %v897
    %v980 = vpop.f32.mrb[0].mxu0
    %v981 = vadd.f32 %v894, %v980
    %v982 = vpop.f32.mrb[0].mxu0
    %983 = vmatprep.mubr.f32.mxu0 0.0
    %984 = vmatmul.mubr.f32.gmra.mrb[0].mxu0 %v900
    %v985 = vpop.f32.mrb[0].mxu0
    %v986 = vadd.f32 %v894, %v985
    %v987 = vpop.f32.mrb[0].mxu0
    %988 = vdwg.mxu0
    %v989 = vadd.f32 %v786, %v981
    %v990 = vadd.f32 %v787, %v986
    %v991 = vsel %vm84, %v989, 0.0
    %992 = vadd.xlane.f32.xlu0 %v991
    %v993 = vpop.xlane.xlu0 %992
    %v994 = vsel %vm84, %v990, 0.0
    %995 = vadd.xlane.f32.xlu0 %v994
    %v996 = vpop.xlane.xlu0 %995
    %v997 = vmul.f32 %v993, %v91
    %v998 = vmul.f32 %v996, %v91
    %v999 = vmul.f32 %v989, %v989
    %v1000 = vmul.f32 %v990, %v990
    %v1001 = vsel %vm84, %v999, 0.0
    %1002 = vadd.xlane.f32.xlu0 %v1001
    %v1003 = vpop.xlane.xlu0 %1002
    %v1004 = vsel %vm84, %v1000, 0.0
    %1005 = vadd.xlane.f32.xlu0 %v1004
    %v1006 = vpop.xlane.xlu0 %1005
    %v1007 = vmul.f32 %v1003, %v91
    %v1008 = vmul.f32 %v1006, %v91
    %v1009 = vsub.f32 %v989, %v997
    %v1010 = vsub.f32 %v990, %v998
    %v1011 = vmul.f32 %v997, %v997
    %v1012 = vmul.f32 %v998, %v998
    %v1013 = vsub.f32 %v1007, %v1011
    %v1014 = vsub.f32 %v1008, %v1012
    %v1015 = vadd.f32 %v1013, 1e-12
    %v1016 = vadd.f32 %v1014, 1e-12
    %v1017 = vrsqrt.pop %v1015
    %v1018 = vrsqrt.pop %v1016
    %v1019 = vmul.f32 %v1009, %v1017
    %v1020 = vmul.f32 %v1010, %v1018
    %v1021 = vlaneseq
    %v1022 = vshrl.u32 %v1021, 7
    %v1023 = vsub.s32 6, %v1022
    %v1024 = vrot.slane %v140, %v1023
    %v1025 = vmul.f32 %v1019, %v1024
    %v1026 = vmul.f32 %v1020, %v1024
    %v1027 = vlaneseq
    %v1028 = vshrl.u32 %v1027, 7
    %v1029 = vsub.s32 7, %v1028
    %v1030 = vrot.slane %v140, %v1029
    %v1031 = vadd.f32 %v1025, %v1030
    %v1032 = vadd.f32 %v1026, %v1030
    %s1033 = scalar_lea.vmem [#allocation7], 32
    %v1034 = vld [vmem:[%s1033] sm:$0xff]
    %v1035 = vld [vmem:[%s1033 + $0x8] sm:$0xff]
    %v1036 = vld [vmem:[%s1033 + $0x10] sm:$0xff]
    %v1037 = vld [vmem:[%s1033 + $0x18] sm:$0xff]
    %s1038 = scalar_lea.vmem [#allocation8], 64
    %v1039 = vld [vmem:[%s1038] sm:$0xff]
    %v1040 = vld [vmem:[%s1038 + $0x8] sm:$0xff]
    %v1041 = vld [vmem:[%s1038 + $0x10] sm:$0xff]
    %v1042 = vld [vmem:[%s1038 + $0x18] sm:$0xff]
    %v1043 = vld [vmem:[%s1038 + $0x20] sm:$0xff]
    %v1044 = vld [vmem:[%s1038 + $0x28] sm:$0xff]
    %v1045 = vld [vmem:[%s1038 + $0x30] sm:$0xff]
    %v1046 = vld [vmem:[%s1038 + $0x38] sm:$0xff]
    %s1047 = scalar_lea.vmem %s5, 8
    %v1048 = vld [vmem:[%s1047] sm:$0xff]
    %v1049 = vlaneseq
    %v1050 = vshrl.u32 %v1049, 7
    %v1051 = vsub.s32 0, %v1050
    %v1052 = vrot.slane %v1048, %v1051
    %v1054 = vsel %vm84, %v1031, 0
    %v1057 = vsel %vm84, %v1032, 0
    %1059 = vmatprep.subr.mxu0 0.0
    %1060 = vmatpush1.msra.mxu0 %v1034
    %1061 = vmatprep.subr.mxu0 0.0
    %1062 = vmatpush1.msra.mxu0 %v1035
    %1063 = vmatprep.subr.mxu0 0.0
    %1064 = vmatpush1.msra.mxu0 %v1036
    %1065 = vmatprep.subr.mxu0 0.0
    %1066 = vmatpush1.msra.mxu0 %v1037
    %1067 = vmatprep.subr.mxu0 0.0
    %1068 = vmatpush1.msra.mxu0 0.0
    %1069 = vmatprep.subr.mxu0 0.0
    %1070 = vmatpush1.msra.mxu0 0.0
    %1071 = vmatprep.subr.mxu0 0.0
    %1072 = vmatpush1.msra.mxu0 0.0
    %1073 = vmatprep.subr.mxu0 0.0
    %1074 = vmatpush1.msra.mxu0 0.0
    %1075 = vmatprep.subr.mxu0 0.0
    %1076 = vmatpush1.msra.mxu0 0.0
    %1077 = vmatprep.subr.mxu0 0.0
    %1078 = vmatpush1.msra.mxu0 0.0
    %1079 = vmatprep.subr.mxu0 0.0
    %1080 = vmatpush1.msra.mxu0 0.0
    %1081 = vmatprep.subr.mxu0 0.0
    %1082 = vmatpush1.msra.mxu0 0.0
    %1083 = vmatprep.subr.mxu0 0.0
    %1084 = vmatpush1.msra.mxu0 0.0
    %1085 = vmatprep.subr.mxu0 0.0
    %1086 = vmatpush1.msra.mxu0 0.0
    %1087 = vmatprep.subr.mxu0 0.0
    %1088 = vmatpush1.msra.mxu0 0.0
    %1089 = vmatprep.subr.mxu0 0.0
    %1090 = vmatpush1.msra.mxu0 0.0
    %1091 = vmatprep.subr.mxu0 0.0
    %1092 = vmatpush1.msra.mxu0 0.0
    %1093 = vmatprep.subr.mxu0 0.0
    %1094 = vmatpush1.msra.mxu0 0.0
    %1095 = vmatprep.subr.mxu0 0.0
    %1096 = vmatpush1.msra.mxu0 0.0
    %1097 = vmatprep.subr.mxu0 0.0
    %1098 = vmatpush1.msra.mxu0 0.0
    %1099 = vmatprep.subr.mxu0 0.0
    %1100 = vmatpush1.msra.mxu0 0.0
    %1101 = vmatprep.subr.mxu0 0.0
    %1102 = vmatpush1.msra.mxu0 0.0
    %1103 = vmatprep.subr.mxu0 0.0
    %1104 = vmatpush1.msra.mxu0 0.0
    %1105 = vmatprep.subr.mxu0 0.0
    %1106 = vmatpush1.msra.mxu0 0.0
    %1107 = vmatprep.subr.mxu0 0.0
    %1108 = vmatpush1.msra.mxu0 0.0
    %1109 = vmatprep.subr.mxu0 0.0
    %1110 = vmatpush1.msra.mxu0 0.0
    %1111 = vmatprep.subr.mxu0 0.0
    %1112 = vmatpush1.msra.mxu0 0.0
    %1113 = vmatprep.subr.mxu0 0.0
    %1114 = vmatpush1.msra.mxu0 0.0
    %1115 = vmatprep.subr.mxu0 0.0
    %1116 = vmatpush1.msra.mxu0 0.0
    %1117 = vmatprep.subr.mxu0 0.0
    %1118 = vmatpush1.msra.mxu0 0.0
    %1119 = vmatprep.subr.mxu0 0.0
    %1120 = vmatpush1.msra.mxu0 0.0
    %1121 = vmatprep.subr.mxu0 0.0
    %1122 = vmatpush1.msra.mxu0 0.0
    %1123 = vmatprep.mubr.f32.mxu0 0.0
    %1124 = vmatmul.mubr.f32.gmra.mrb[0].mxu0 %v1054
    %v1125 = vpop.f32.mrb[0].mxu0
    %v1126 = vadd.f32 %v1052, %v1125
    %v1127 = vpop.f32.mrb[0].mxu0
    %1128 = vmatprep.mubr.f32.mxu0 0.0
    %1129 = vmatmul.mubr.f32.gmra.mrb[0].mxu0 %v1057
    %v1130 = vpop.f32.mrb[0].mxu0
    %v1131 = vadd.f32 %v1052, %v1130
    %v1132 = vpop.f32.mrb[0].mxu0
    %1133 = vdwg.mxu0
    %1136 = vrot.lane.b32.xlu0 %v1126, 96
    %v1137 = vpop.permute.xlu0 %1136
    %1138 = vrot.lane.b32.xlu0 %v1131, 96
    %v1139 = vpop.permute.xlu0 %1138
    %v1140 = vsel %vm232, %v1126, 0
    %v1142 = vsel %vm232, %v1131, 0
    %v1144 = vsel %vm232, %v1137, 0
    %v1146 = vsel %vm232, %v1139, 0
    %1148 = vmatprep.subr.mxu0 0.0
    %1149 = vmatpush1.xpose.msra.mxu0 %v1144
    %1150 = vmatprep.subr.mxu0 0.0
    %1151 = vmatpush1.xpose.msra.mxu0 %v1146
    %1152 = vmatprep.subr.mxu0 0.0
    %1153 = vmatpush1.xpose.msra.mxu0 0.0
    %1154 = vmatprep.subr.mxu0 0.0
    %1155 = vmatpush1.xpose.msra.mxu0 0.0
    %1156 = vmatprep.subr.mxu0 0.0
    %1157 = vmatpush1.xpose.msra.mxu0 0.0
    %1158 = vmatprep.subr.mxu0 0.0
    %1159 = vmatpush1.xpose.msra.mxu0 0.0
    %1160 = vmatprep.subr.mxu0 0.0
    %1161 = vmatpush1.xpose.msra.mxu0 0.0
    %1162 = vmatprep.subr.mxu0 0.0
    %1163 = vmatpush1.xpose.msra.mxu0 0.0
    %1164 = vmatprep.subr.mxu0 0.0
    %1165 = vmatpush1.xpose.msra.mxu0 0.0
    %1166 = vmatprep.subr.mxu0 0.0
    %1167 = vmatpush1.xpose.msra.mxu0 0.0
    %1168 = vmatprep.subr.mxu0 0.0
    %1169 = vmatpush1.xpose.msra.mxu0 0.0
    %1170 = vmatprep.subr.mxu0 0.0
    %1171 = vmatpush1.xpose.msra.mxu0 0.0
    %1172 = vmatprep.subr.mxu0 0.0
    %1173 = vmatpush1.xpose.msra.mxu0 0.0
    %1174 = vmatprep.subr.mxu0 0.0
    %1175 = vmatpush1.xpose.msra.mxu0 0.0
    %1176 = vmatprep.subr.mxu0 0.0
    %1177 = vmatpush1.xpose.msra.mxu0 0.0
    %1178 = vmatprep.subr.mxu0 0.0
    %1179 = vmatpush1.xpose.msra.mxu0 0.0
    %1180 = vmatprep.subr.mxu0 0.0
    %1181 = vmatpush1.xpose.msra.mxu0 0.0
    %1182 = vmatprep.subr.mxu0 0.0
    %1183 = vmatpush1.xpose.msra.mxu0 0.0
    %1184 = vmatprep.subr.mxu0 0.0
    %1185 = vmatpush1.xpose.msra.mxu0 0.0
    %1186 = vmatprep.subr.mxu0 0.0
    %1187 = vmatpush1.xpose.msra.mxu0 0.0
    %1188 = vmatprep.subr.mxu0 0.0
    %1189 = vmatpush1.xpose.msra.mxu0 0.0
    %1190 = vmatprep.subr.mxu0 0.0
    %1191 = vmatpush1.xpose.msra.mxu0 0.0
    %1192 = vmatprep.subr.mxu0 0.0
    %1193 = vmatpush1.xpose.msra.mxu0 0.0
    %1194 = vmatprep.subr.mxu0 0.0
    %1195 = vmatpush1.xpose.msra.mxu0 0.0
    %1196 = vmatprep.subr.mxu0 0.0
    %1197 = vmatpush1.xpose.msra.mxu0 0.0
    %1198 = vmatprep.subr.mxu0 0.0
    %1199 = vmatpush1.xpose.msra.mxu0 0.0
    %1200 = vmatprep.subr.mxu0 0.0
    %1201 = vmatpush1.xpose.msra.mxu0 0.0
    %1202 = vmatprep.subr.mxu0 0.0
    %1203 = vmatpush1.xpose.msra.mxu0 0.0
    %1204 = vmatprep.subr.mxu0 0.0
    %1205 = vmatpush1.xpose.msra.mxu0 0.0
    %1206 = vmatprep.subr.mxu0 0.0
    %1207 = vmatpush1.xpose.msra.mxu0 0.0
    %1208 = vmatprep.subr.mxu0 0.0
    %1209 = vmatpush1.xpose.msra.mxu0 0.0
    %1210 = vmatprep.subr.mxu0 0.0
    %1211 = vmatpush1.xpose.msra.mxu0 0.0
    %1212 = vmatprep.mubr.f32.mxu0 0.0
    %1213 = vmatmul.mubr.f32.gmra.mrb[0].mxu0 %v1140
    %v1214 = vpop.f32.mrb[0].mxu0
    %v1215 = vadd.f32 0.0, %v1214
    %v1216 = vpop.f32.mrb[0].mxu0
    %1217 = vmatprep.mubr.f32.mxu0 0.0
    %1218 = vmatmul.mubr.f32.gmra.mrb[0].mxu0 %v1142
    %v1219 = vpop.f32.mrb[0].mxu0
    %v1220 = vadd.f32 0.0, %v1219
    %v1221 = vpop.f32.mrb[0].mxu0
    %1222 = vdwg.mxu0
    %v1223 = vmul.f32 %v1215, 0.25
    %v1224 = vmul.f32 %v1220, 0.25
    %v1225 = vadd.f32 %v1223, %v81
    %v1226 = vadd.f32 %v1224, %v82
    %v1227 = vsel %vm232, %v1225, -inf
    %1228 = vmax.xlane.f32.xlu0 %v1227
    %v1229 = vpop.xlane.xlu0 %1228
    %v1230 = vsel %vm232, %v1226, -inf
    %1231 = vmax.xlane.f32.xlu0 %v1230
    %v1232 = vpop.xlane.xlu0 %1231
    %v1233 = vsub.f32 %v1225, %v1229
    %v1234 = vsub.f32 %v1226, %v1232
    %v1235 = vmul.f32 %v1233, 1.442695
    %v1236 = vpow.pop %v1235
    %v1237 = vmul.f32 %v1234, 1.442695
    %v1238 = vpow.pop %v1237
    %v1239 = vsel %vm232, %v1236, 0.0
    %1240 = vadd.xlane.f32.xlu0 %v1239
    %v1241 = vpop.xlane.xlu0 %1240
    %v1242 = vsel %vm232, %v1238, 0.0
    %1243 = vadd.xlane.f32.xlu0 %v1242
    %v1244 = vpop.xlane.xlu0 %1243
    %v1245 = vrcp.pop %v1241
    %v1246 = vrcp.pop %v1244
    %v1247 = vmul.f32 %v1236, %v1245
    %v1248 = vmul.f32 %v1238, %v1246
    %1249 = vrot.lane.b32.xlu0 %v1126, 64
    %v1250 = vpop.permute.xlu0 %1249
    %1251 = vrot.lane.b32.xlu0 %v1131, 64
    %v1252 = vpop.permute.xlu0 %1251
    %v1256 = vsel %vm232, %v1247, 0
    %v1259 = vsel %vm232, %v1248, 0
    %1261 = vmatprep.subr.mxu0 0.0
    %1262 = vmatpush1.msra.mxu0 %v1250
    %1263 = vmatprep.subr.mxu0 0.0
    %1264 = vmatpush1.msra.mxu0 %v1252
    %1265 = vmatprep.subr.mxu0 0.0
    %1266 = vmatpush1.msra.mxu0 0.0
    %1267 = vmatprep.subr.mxu0 0.0
    %1268 = vmatpush1.msra.mxu0 0.0
    %1269 = vmatprep.subr.mxu0 0.0
    %1270 = vmatpush1.msra.mxu0 0.0
    %1271 = vmatprep.subr.mxu0 0.0
    %1272 = vmatpush1.msra.mxu0 0.0
    %1273 = vmatprep.subr.mxu0 0.0
    %1274 = vmatpush1.msra.mxu0 0.0
    %1275 = vmatprep.subr.mxu0 0.0
    %1276 = vmatpush1.msra.mxu0 0.0
    %1277 = vmatprep.subr.mxu0 0.0
    %1278 = vmatpush1.msra.mxu0 0.0
    %1279 = vmatprep.subr.mxu0 0.0
    %1280 = vmatpush1.msra.mxu0 0.0
    %1281 = vmatprep.subr.mxu0 0.0
    %1282 = vmatpush1.msra.mxu0 0.0
    %1283 = vmatprep.subr.mxu0 0.0
    %1284 = vmatpush1.msra.mxu0 0.0
    %1285 = vmatprep.subr.mxu0 0.0
    %1286 = vmatpush1.msra.mxu0 0.0
    %1287 = vmatprep.subr.mxu0 0.0
    %1288 = vmatpush1.msra.mxu0 0.0
    %1289 = vmatprep.subr.mxu0 0.0
    %1290 = vmatpush1.msra.mxu0 0.0
    %1291 = vmatprep.subr.mxu0 0.0
    %1292 = vmatpush1.msra.mxu0 0.0
    %1293 = vmatprep.subr.mxu0 0.0
    %1294 = vmatpush1.msra.mxu0 0.0
    %1295 = vmatprep.subr.mxu0 0.0
    %1296 = vmatpush1.msra.mxu0 0.0
    %1297 = vmatprep.subr.mxu0 0.0
    %1298 = vmatpush1.msra.mxu0 0.0
    %1299 = vmatprep.subr.mxu0 0.0
    %1300 = vmatpush1.msra.mxu0 0.0
    %1301 = vmatprep.subr.mxu0 0.0
    %1302 = vmatpush1.msra.mxu0 0.0
    %1303 = vmatprep.subr.mxu0 0.0
    %1304 = vmatpush1.msra.mxu0 0.0
    %1305 = vmatprep.subr.mxu0 0.0
    %1306 = vmatpush1.msra.mxu0 0.0
    %1307 = vmatprep.subr.mxu0 0.0
    %1308 = vmatpush1.msra.mxu0 0.0
    %1309 = vmatprep.subr.mxu0 0.0
    %1310 = vmatpush1.msra.mxu0 0.0
    %1311 = vmatprep.subr.mxu0 0.0
    %1312 = vmatpush1.msra.mxu0 0.0
    %1313 = vmatprep.subr.mxu0 0.0
    %1314 = vmatpush1.msra.mxu0 0.0
    %1315 = vmatprep.subr.mxu0 0.0
    %1316 = vmatpush1.msra.mxu0 0.0
    %1317 = vmatprep.subr.mxu0 0.0
    %1318 = vmatpush1.msra.mxu0 0.0
    %1319 = vmatprep.subr.mxu0 0.0
    %1320 = vmatpush1.msra.mxu0 0.0
    %1321 = vmatprep.subr.mxu0 0.0
    %1322 = vmatpush1.msra.mxu0 0.0
    %1323 = vmatprep.subr.mxu0 0.0
    %1324 = vmatpush1.msra.mxu0 0.0
    %1325 = vmatprep.mubr.f32.mxu0 0.0
    %1326 = vmatmul.mubr.f32.gmra.mrb[0].mxu0 %v1256
    %v1327 = vpop.f32.mrb[0].mxu0
    %v1328 = vadd.f32 0.0, %v1327
    %v1329 = vpop.f32.mrb[0].mxu0
    %1330 = vmatprep.mubr.f32.mxu0 0.0
    %1331 = vmatmul.mubr.f32.gmra.mrb[0].mxu0 %v1259
    %v1332 = vpop.f32.mrb[0].mxu0
    %v1333 = vadd.f32 0.0, %v1332
    %v1334 = vpop.f32.mrb[0].mxu0
    %1335 = vdwg.mxu0
    %1336 = vrot.lane.b32.xlu0 %v1126, 112
    %v1337 = vpop.permute.xlu0 %1336
    %1338 = vrot.lane.b32.xlu0 %v1131, 112
    %v1339 = vpop.permute.xlu0 %1338
    %1340 = vrot.lane.b32.xlu0 %v1126, 80
    %v1341 = vpop.permute.xlu0 %1340
    %1342 = vrot.lane.b32.xlu0 %v1131, 80
    %v1343 = vpop.permute.xlu0 %1342
    %v1344 = vsel %vm232, %v1337, 0
    %v1346 = vsel %vm232, %v1339, 0
    %v1348 = vsel %vm232, %v1341, 0
    %v1350 = vsel %vm232, %v1343, 0
    %1352 = vmatprep.subr.mxu0 0.0
    %1353 = vmatpush1.xpose.msra.mxu0 %v1348
    %1354 = vmatprep.subr.mxu0 0.0
    %1355 = vmatpush1.xpose.msra.mxu0 %v1350
    %1356 = vmatprep.subr.mxu0 0.0
    %1357 = vmatpush1.xpose.msra.mxu0 0.0
    %1358 = vmatprep.subr.mxu0 0.0
    %1359 = vmatpush1.xpose.msra.mxu0 0.0
    %1360 = vmatprep.subr.mxu0 0.0
    %1361 = vmatpush1.xpose.msra.mxu0 0.0
    %1362 = vmatprep.subr.mxu0 0.0
    %1363 = vmatpush1.xpose.msra.mxu0 0.0
    %1364 = vmatprep.subr.mxu0 0.0
    %1365 = vmatpush1.xpose.msra.mxu0 0.0
    %1366 = vmatprep.subr.mxu0 0.0
    %1367 = vmatpush1.xpose.msra.mxu0 0.0
    %1368 = vmatprep.subr.mxu0 0.0
    %1369 = vmatpush1.xpose.msra.mxu0 0.0
    %1370 = vmatprep.subr.mxu0 0.0
    %1371 = vmatpush1.xpose.msra.mxu0 0.0
    %1372 = vmatprep.subr.mxu0 0.0
    %1373 = vmatpush1.xpose.msra.mxu0 0.0
    %1374 = vmatprep.subr.mxu0 0.0
    %1375 = vmatpush1.xpose.msra.mxu0 0.0
    %1376 = vmatprep.subr.mxu0 0.0
    %1377 = vmatpush1.xpose.msra.mxu0 0.0
    %1378 = vmatprep.subr.mxu0 0.0
    %1379 = vmatpush1.xpose.msra.mxu0 0.0
    %1380 = vmatprep.subr.mxu0 0.0
    %1381 = vmatpush1.xpose.msra.mxu0 0.0
    %1382 = vmatprep.subr.mxu0 0.0
    %1383 = vmatpush1.xpose.msra.mxu0 0.0
    %1384 = vmatprep.subr.mxu0 0.0
    %1385 = vmatpush1.xpose.msra.mxu0 0.0
    %1386 = vmatprep.subr.mxu0 0.0
    %1387 = vmatpush1.xpose.msra.mxu0 0.0
    %1388 = vmatprep.subr.mxu0 0.0
    %1389 = vmatpush1.xpose.msra.mxu0 0.0
    %1390 = vmatprep.subr.mxu0 0.0
    %1391 = vmatpush1.xpose.msra.mxu0 0.0
    %1392 = vmatprep.subr.mxu0 0.0
    %1393 = vmatpush1.xpose.msra.mxu0 0.0
    %1394 = vmatprep.subr.mxu0 0.0
    %1395 = vmatpush1.xpose.msra.mxu0 0.0
    %1396 = vmatprep.subr.mxu0 0.0
    %1397 = vmatpush1.xpose.msra.mxu0 0.0
    %1398 = vmatprep.subr.mxu0 0.0
    %1399 = vmatpush1.xpose.msra.mxu0 0.0
    %1400 = vmatprep.subr.mxu0 0.0
    %1401 = vmatpush1.xpose.msra.mxu0 0.0
    %1402 = vmatprep.subr.mxu0 0.0
    %1403 = vmatpush1.xpose.msra.mxu0 0.0
    %1404 = vmatprep.subr.mxu0 0.0
    %1405 = vmatpush1.xpose.msra.mxu0 0.0
    %1406 = vmatprep.subr.mxu0 0.0
    %1407 = vmatpush1.xpose.msra.mxu0 0.0
    %1408 = vmatprep.subr.mxu0 0.0
    %1409 = vmatpush1.xpose.msra.mxu0 0.0
    %1410 = vmatprep.subr.mxu0 0.0
    %1411 = vmatpush1.xpose.msra.mxu0 0.0
    %1412 = vmatprep.subr.mxu0 0.0
    %1413 = vmatpush1.xpose.msra.mxu0 0.0
    %1414 = vmatprep.subr.mxu0 0.0
    %1415 = vmatpush1.xpose.msra.mxu0 0.0
    %1416 = vmatprep.mubr.f32.mxu0 0.0
    %1417 = vmatmul.mubr.f32.gmra.mrb[0].mxu0 %v1344
    %v1418 = vpop.f32.mrb[0].mxu0
    %v1419 = vadd.f32 0.0, %v1418
    %v1420 = vpop.f32.mrb[0].mxu0
    %1421 = vmatprep.mubr.f32.mxu0 0.0
    %1422 = vmatmul.mubr.f32.gmra.mrb[0].mxu0 %v1346
    %v1423 = vpop.f32.mrb[0].mxu0
    %v1424 = vadd.f32 0.0, %v1423
    %v1425 = vpop.f32.mrb[0].mxu0
    %1426 = vdwg.mxu0
    %v1427 = vmul.f32 %v1419, 0.25
    %v1428 = vmul.f32 %v1424, 0.25
    %v1429 = vadd.f32 %v1427, %v81
    %v1430 = vadd.f32 %v1428, %v82
    %v1431 = vsel %vm232, %v1429, -inf
    %1432 = vmax.xlane.f32.xlu0 %v1431
    %v1433 = vpop.xlane.xlu0 %1432
    %v1434 = vsel %vm232, %v1430, -inf
    %1435 = vmax.xlane.f32.xlu0 %v1434
    %v1436 = vpop.xlane.xlu0 %1435
    %v1437 = vsub.f32 %v1429, %v1433
    %v1438 = vsub.f32 %v1430, %v1436
    %v1439 = vmul.f32 %v1437, 1.442695
    %v1440 = vpow.pop %v1439
    %v1441 = vmul.f32 %v1438, 1.442695
    %v1442 = vpow.pop %v1441
    %v1443 = vsel %vm232, %v1440, 0.0
    %1444 = vadd.xlane.f32.xlu0 %v1443
    %v1445 = vpop.xlane.xlu0 %1444
    %v1446 = vsel %vm232, %v1442, 0.0
    %1447 = vadd.xlane.f32.xlu0 %v1446
    %v1448 = vpop.xlane.xlu0 %1447
    %v1449 = vrcp.pop %v1445
    %v1450 = vrcp.pop %v1448
    %v1451 = vmul.f32 %v1440, %v1449
    %v1452 = vmul.f32 %v1442, %v1450
    %1453 = vrot.lane.b32.xlu0 %v1126, 48
    %v1454 = vpop.permute.xlu0 %1453
    %1455 = vrot.lane.b32.xlu0 %v1131, 48
    %v1456 = vpop.permute.xlu0 %1455
    %v1460 = vsel %vm232, %v1451, 0
    %v1463 = vsel %vm232, %v1452, 0
    %1465 = vmatprep.subr.mxu0 0.0
    %1466 = vmatpush1.msra.mxu0 %v1454
    %1467 = vmatprep.subr.mxu0 0.0
    %1468 = vmatpush1.msra.mxu0 %v1456
    %1469 = vmatprep.subr.mxu0 0.0
    %1470 = vmatpush1.msra.mxu0 0.0
    %1471 = vmatprep.subr.mxu0 0.0
    %1472 = vmatpush1.msra.mxu0 0.0
    %1473 = vmatprep.subr.mxu0 0.0
    %1474 = vmatpush1.msra.mxu0 0.0
    %1475 = vmatprep.subr.mxu0 0.0
    %1476 = vmatpush1.msra.mxu0 0.0
    %1477 = vmatprep.subr.mxu0 0.0
    %1478 = vmatpush1.msra.mxu0 0.0
    %1479 = vmatprep.subr.mxu0 0.0
    %1480 = vmatpush1.msra.mxu0 0.0
    %1481 = vmatprep.subr.mxu0 0.0
    %1482 = vmatpush1.msra.mxu0 0.0
    %1483 = vmatprep.subr.mxu0 0.0
    %1484 = vmatpush1.msra.mxu0 0.0
    %1485 = vmatprep.subr.mxu0 0.0
    %1486 = vmatpush1.msra.mxu0 0.0
    %1487 = vmatprep.subr.mxu0 0.0
    %1488 = vmatpush1.msra.mxu0 0.0
    %1489 = vmatprep.subr.mxu0 0.0
    %1490 = vmatpush1.msra.mxu0 0.0
    %1491 = vmatprep.subr.mxu0 0.0
    %1492 = vmatpush1.msra.mxu0 0.0
    %1493 = vmatprep.subr.mxu0 0.0
    %1494 = vmatpush1.msra.mxu0 0.0
    %1495 = vmatprep.subr.mxu0 0.0
    %1496 = vmatpush1.msra.mxu0 0.0
    %1497 = vmatprep.subr.mxu0 0.0
    %1498 = vmatpush1.msra.mxu0 0.0
    %1499 = vmatprep.subr.mxu0 0.0
    %1500 = vmatpush1.msra.mxu0 0.0
    %1501 = vmatprep.subr.mxu0 0.0
    %1502 = vmatpush1.msra.mxu0 0.0
    %1503 = vmatprep.subr.mxu0 0.0
    %1504 = vmatpush1.msra.mxu0 0.0
    %1505 = vmatprep.subr.mxu0 0.0
    %1506 = vmatpush1.msra.mxu0 0.0
    %1507 = vmatprep.subr.mxu0 0.0
    %1508 = vmatpush1.msra.mxu0 0.0
    %1509 = vmatprep.subr.mxu0 0.0
    %1510 = vmatpush1.msra.mxu0 0.0
    %1511 = vmatprep.subr.mxu0 0.0
    %1512 = vmatpush1.msra.mxu0 0.0
    %1513 = vmatprep.subr.mxu0 0.0
    %1514 = vmatpush1.msra.mxu0 0.0
    %1515 = vmatprep.subr.mxu0 0.0
    %1516 = vmatpush1.msra.mxu0 0.0
    %1517 = vmatprep.subr.mxu0 0.0
    %1518 = vmatpush1.msra.mxu0 0.0
    %1519 = vmatprep.subr.mxu0 0.0
    %1520 = vmatpush1.msra.mxu0 0.0
    %1521 = vmatprep.subr.mxu0 0.0
    %1522 = vmatpush1.msra.mxu0 0.0
    %1523 = vmatprep.subr.mxu0 0.0
    %1524 = vmatpush1.msra.mxu0 0.0
    %1525 = vmatprep.subr.mxu0 0.0
    %1526 = vmatpush1.msra.mxu0 0.0
    %1527 = vmatprep.subr.mxu0 0.0
    %1528 = vmatpush1.msra.mxu0 0.0
    %1529 = vmatprep.mubr.f32.mxu0 0.0
    %1530 = vmatmul.mubr.f32.gmra.mrb[0].mxu0 %v1460
    %v1531 = vpop.f32.mrb[0].mxu0
    %v1532 = vadd.f32 0.0, %v1531
    %v1533 = vpop.f32.mrb[0].mxu0
    %1534 = vmatprep.mubr.f32.mxu0 0.0
    %1535 = vmatmul.mubr.f32.gmra.mrb[0].mxu0 %v1463
    %v1536 = vpop.f32.mrb[0].mxu0
    %v1537 = vadd.f32 0.0, %v1536
    %v1538 = vpop.f32.mrb[0].mxu0
    %1539 = vdwg.mxu0
    %1542 = vrot.lane.b32.xlu0 %v1532, 16
    %v1543 = vpop.permute.xlu0 %1542
    %1544 = vrot.lane.b32.xlu0 %v1537, 16
    %v1545 = vpop.permute.xlu0 %1544
    %v1548 = vsel %vm232, %v1328, %v1543
    %v1549 = vsel %vm232, %v1333, %v1545
    %v1550 = vlaneseq
    %v1551 = vshrl.u32 %v1550, 7
    %v1552 = vsub.s32 1, %v1551
    %v1553 = vrot.slane %v1048, %v1552
    %1558 = vrot.lane.b32.xlu0 %v1034, 32
    %v1559 = vpop.permute.xlu0 %1558
    %1560 = vrot.lane.b32.xlu0 %v1035, 32
    %v1561 = vpop.permute.xlu0 %1560
    %1562 = vrot.lane.b32.xlu0 %v1036, 32
    %v1563 = vpop.permute.xlu0 %1562
    %1564 = vrot.lane.b32.xlu0 %v1037, 32
    %v1565 = vpop.permute.xlu0 %1564
    %v1571 = vsel %vm84, %v1548, 0
    %v1574 = vsel %vm84, %v1549, 0
    %1576 = vmatprep.subr.mxu0 0.0
    %1577 = vmatpush1.msra.mxu0 %v1559
    %1578 = vmatprep.subr.mxu0 0.0
    %1579 = vmatpush1.msra.mxu0 %v1561
    %1580 = vmatprep.subr.mxu0 0.0
    %1581 = vmatpush1.msra.mxu0 %v1563
    %1582 = vmatprep.subr.mxu0 0.0
    %1583 = vmatpush1.msra.mxu0 %v1565
    %1584 = vmatprep.subr.mxu0 0.0
    %1585 = vmatpush1.msra.mxu0 0.0
    %1586 = vmatprep.subr.mxu0 0.0
    %1587 = vmatpush1.msra.mxu0 0.0
    %1588 = vmatprep.subr.mxu0 0.0
    %1589 = vmatpush1.msra.mxu0 0.0
    %1590 = vmatprep.subr.mxu0 0.0
    %1591 = vmatpush1.msra.mxu0 0.0
    %1592 = vmatprep.subr.mxu0 0.0
    %1593 = vmatpush1.msra.mxu0 0.0
    %1594 = vmatprep.subr.mxu0 0.0
    %1595 = vmatpush1.msra.mxu0 0.0
    %1596 = vmatprep.subr.mxu0 0.0
    %1597 = vmatpush1.msra.mxu0 0.0
    %1598 = vmatprep.subr.mxu0 0.0
    %1599 = vmatpush1.msra.mxu0 0.0
    %1600 = vmatprep.subr.mxu0 0.0
    %1601 = vmatpush1.msra.mxu0 0.0
    %1602 = vmatprep.subr.mxu0 0.0
    %1603 = vmatpush1.msra.mxu0 0.0
    %1604 = vmatprep.subr.mxu0 0.0
    %1605 = vmatpush1.msra.mxu0 0.0
    %1606 = vmatprep.subr.mxu0 0.0
    %1607 = vmatpush1.msra.mxu0 0.0
    %1608 = vmatprep.subr.mxu0 0.0
    %1609 = vmatpush1.msra.mxu0 0.0
    %1610 = vmatprep.subr.mxu0 0.0
    %1611 = vmatpush1.msra.mxu0 0.0
    %1612 = vmatprep.subr.mxu0 0.0
    %1613 = vmatpush1.msra.mxu0 0.0
    %1614 = vmatprep.subr.mxu0 0.0
    %1615 = vmatpush1.msra.mxu0 0.0
    %1616 = vmatprep.subr.mxu0 0.0
    %1617 = vmatpush1.msra.mxu0 0.0
    %1618 = vmatprep.subr.mxu0 0.0
    %1619 = vmatpush1.msra.mxu0 0.0
    %1620 = vmatprep.subr.mxu0 0.0
    %1621 = vmatpush1.msra.mxu0 0.0
    %1622 = vmatprep.subr.mxu0 0.0
    %1623 = vmatpush1.msra.mxu0 0.0
    %1624 = vmatprep.subr.mxu0 0.0
    %1625 = vmatpush1.msra.mxu0 0.0
    %1626 = vmatprep.subr.mxu0 0.0
    %1627 = vmatpush1.msra.mxu0 0.0
    %1628 = vmatprep.subr.mxu0 0.0
    %1629 = vmatpush1.msra.mxu0 0.0
    %1630 = vmatprep.subr.mxu0 0.0
    %1631 = vmatpush1.msra.mxu0 0.0
    %1632 = vmatprep.subr.mxu0 0.0
    %1633 = vmatpush1.msra.mxu0 0.0
    %1634 = vmatprep.subr.mxu0 0.0
    %1635 = vmatpush1.msra.mxu0 0.0
    %1636 = vmatprep.subr.mxu0 0.0
    %1637 = vmatpush1.msra.mxu0 0.0
    %1638 = vmatprep.subr.mxu0 0.0
    %1639 = vmatpush1.msra.mxu0 0.0
    %1640 = vmatprep.mubr.f32.mxu0 0.0
    %1641 = vmatmul.mubr.f32.gmra.mrb[0].mxu0 %v1571
    %v1642 = vpop.f32.mrb[0].mxu0
    %v1643 = vadd.f32 %v1553, %v1642
    %v1644 = vpop.f32.mrb[0].mxu0
    %1645 = vmatprep.mubr.f32.mxu0 0.0
    %1646 = vmatmul.mubr.f32.gmra.mrb[0].mxu0 %v1574
    %v1647 = vpop.f32.mrb[0].mxu0
    %v1648 = vadd.f32 %v1553, %v1647
    %v1649 = vpop.f32.mrb[0].mxu0
    %1650 = vdwg.mxu0
    %v1651 = vadd.f32 %v1031, %v1643
    %v1652 = vadd.f32 %v1032, %v1648
    %v1653 = vsel %vm84, %v1651, 0.0
    %1654 = vadd.xlane.f32.xlu0 %v1653
    %v1655 = vpop.xlane.xlu0 %1654
    %v1656 = vsel %vm84, %v1652, 0.0
    %1657 = vadd.xlane.f32.xlu0 %v1656
    %v1658 = vpop.xlane.xlu0 %1657
    %v1659 = vmul.f32 %v1655, %v91
    %v1660 = vmul.f32 %v1658, %v91
    %v1661 = vmul.f32 %v1651, %v1651
    %v1662 = vmul.f32 %v1652, %v1652
    %v1663 = vsel %vm84, %v1661, 0.0
    %1664 = vadd.xlane.f32.xlu0 %v1663
    %v1665 = vpop.xlane.xlu0 %1664
    %v1666 = vsel %vm84, %v1662, 0.0
    %1667 = vadd.xlane.f32.xlu0 %v1666
    %v1668 = vpop.xlane.xlu0 %1667
    %v1669 = vmul.f32 %v1665, %v91
    %v1670 = vmul.f32 %v1668, %v91
    %v1671 = vsub.f32 %v1651, %v1659
    %v1672 = vsub.f32 %v1652, %v1660
    %v1673 = vmul.f32 %v1659, %v1659
    %v1674 = vmul.f32 %v1660, %v1660
    %v1675 = vsub.f32 %v1669, %v1673
    %v1676 = vsub.f32 %v1670, %v1674
    %v1677 = vadd.f32 %v1675, 1e-12
    %v1678 = vadd.f32 %v1676, 1e-12
    %v1679 = vrsqrt.pop %v1677
    %v1680 = vrsqrt.pop %v1678
    %v1681 = vmul.f32 %v1671, %v1679
    %v1682 = vmul.f32 %v1672, %v1680
    %v1683 = vlaneseq
    %v1684 = vshrl.u32 %v1683, 7
    %v1685 = vsub.s32 2, %v1684
    %v1686 = vrot.slane %v1048, %v1685
    %v1687 = vmul.f32 %v1681, %v1686
    %v1688 = vmul.f32 %v1682, %v1686
    %v1689 = vlaneseq
    %v1690 = vshrl.u32 %v1689, 7
    %v1691 = vsub.s32 3, %v1690
    %v1692 = vrot.slane %v1048, %v1691
    %v1693 = vadd.f32 %v1687, %v1692
    %v1694 = vadd.f32 %v1688, %v1692
    %v1695 = vlaneseq
    %v1696 = vshrl.u32 %v1695, 7
    %v1697 = vsub.s32 4, %v1696
    %v1698 = vrot.slane %v1048, %v1697
    %v1700 = vsel %vm84, %v1693, 0
    %v1703 = vsel %vm84, %v1694, 0
    %1705 = vmatprep.subr.mxu0 0.0
    %1706 = vmatpush1.msra.mxu0 %v1039
    %1707 = vmatprep.subr.mxu0 0.0
    %1708 = vmatpush1.msra.mxu0 %v1040
    %1709 = vmatprep.subr.mxu0 0.0
    %1710 = vmatpush1.msra.mxu0 %v1041
    %1711 = vmatprep.subr.mxu0 0.0
    %1712 = vmatpush1.msra.mxu0 %v1042
    %1713 = vmatprep.subr.mxu0 0.0
    %1714 = vmatpush1.msra.mxu0 0.0
    %1715 = vmatprep.subr.mxu0 0.0
    %1716 = vmatpush1.msra.mxu0 0.0
    %1717 = vmatprep.subr.mxu0 0.0
    %1718 = vmatpush1.msra.mxu0 0.0
    %1719 = vmatprep.subr.mxu0 0.0
    %1720 = vmatpush1.msra.mxu0 0.0
    %1721 = vmatprep.subr.mxu0 0.0
    %1722 = vmatpush1.msra.mxu0 0.0
    %1723 = vmatprep.subr.mxu0 0.0
    %1724 = vmatpush1.msra.mxu0 0.0
    %1725 = vmatprep.subr.mxu0 0.0
    %1726 = vmatpush1.msra.mxu0 0.0
    %1727 = vmatprep.subr.mxu0 0.0
    %1728 = vmatpush1.msra.mxu0 0.0
    %1729 = vmatprep.subr.mxu0 0.0
    %1730 = vmatpush1.msra.mxu0 0.0
    %1731 = vmatprep.subr.mxu0 0.0
    %1732 = vmatpush1.msra.mxu0 0.0
    %1733 = vmatprep.subr.mxu0 0.0
    %1734 = vmatpush1.msra.mxu0 0.0
    %1735 = vmatprep.subr.mxu0 0.0
    %1736 = vmatpush1.msra.mxu0 0.0
    %1737 = vmatprep.subr.mxu0 0.0
    %1738 = vmatpush1.msra.mxu0 0.0
    %1739 = vmatprep.subr.mxu0 0.0
    %1740 = vmatpush1.msra.mxu0 0.0
    %1741 = vmatprep.subr.mxu0 0.0
    %1742 = vmatpush1.msra.mxu0 0.0
    %1743 = vmatprep.subr.mxu0 0.0
    %1744 = vmatpush1.msra.mxu0 0.0
    %1745 = vmatprep.subr.mxu0 0.0
    %1746 = vmatpush1.msra.mxu0 0.0
    %1747 = vmatprep.subr.mxu0 0.0
    %1748 = vmatpush1.msra.mxu0 0.0
    %1749 = vmatprep.subr.mxu0 0.0
    %1750 = vmatpush1.msra.mxu0 0.0
    %1751 = vmatprep.subr.mxu0 0.0
    %1752 = vmatpush1.msra.mxu0 0.0
    %1753 = vmatprep.subr.mxu0 0.0
    %1754 = vmatpush1.msra.mxu0 0.0
    %1755 = vmatprep.subr.mxu0 0.0
    %1756 = vmatpush1.msra.mxu0 0.0
    %1757 = vmatprep.subr.mxu0 0.0
    %1758 = vmatpush1.msra.mxu0 0.0
    %1759 = vmatprep.subr.mxu0 0.0
    %1760 = vmatpush1.msra.mxu0 0.0
    %1761 = vmatprep.subr.mxu0 0.0
    %1762 = vmatpush1.msra.mxu0 0.0
    %1763 = vmatprep.subr.mxu0 0.0
    %1764 = vmatpush1.msra.mxu0 0.0
    %1765 = vmatprep.subr.mxu0 0.0
    %1766 = vmatpush1.msra.mxu0 0.0
    %1767 = vmatprep.subr.mxu0 0.0
    %1768 = vmatpush1.msra.mxu0 0.0
    %1769 = vmatprep.mubr.f32.mxu0 0.0
    %1770 = vmatmul.mubr.f32.gmra.mrb[0].mxu0 %v1700
    %v1771 = vpop.f32.mrb[0].mxu0
    %v1772 = vadd.f32 %v1698, %v1771
    %v1773 = vpop.f32.mrb[0].mxu0
    %1774 = vmatprep.mubr.f32.mxu0 0.0
    %1775 = vmatmul.mubr.f32.gmra.mrb[0].mxu0 %v1703
    %v1776 = vpop.f32.mrb[0].mxu0
    %v1777 = vadd.f32 %v1698, %v1776
    %v1778 = vpop.f32.mrb[0].mxu0
    %1779 = vdwg.mxu0
    %v1780 = vmul.f32 %v1772, %v1772
    %v1781 = vmul.f32 %v1777, %v1777
    %v1782 = vmul.f32 %v1772, %v1780
    %v1783 = vmul.f32 %v1777, %v1781
    %v1784 = vmul.f32 %v1782, 0.044715
    %v1785 = vmul.f32 %v1783, 0.044715
    %v1786 = vadd.f32 %v1772, %v1784
    %v1787 = vadd.f32 %v1777, %v1785
    %v1788 = vmul.f32 %v1786, 0.7978846
    %v1789 = vmul.f32 %v1787, 0.7978846
    %v1790 = vtanh.pop %v1788
    %v1791 = vtanh.pop %v1789
    %v1792 = vadd.f32 %v1790, 1.0
    %v1793 = vadd.f32 %v1791, 1.0
    %v1794 = vmul.f32 %v1792, 0.5
    %v1795 = vmul.f32 %v1793, 0.5
    %v1796 = vmul.f32 %v1772, %v1794
    %v1797 = vmul.f32 %v1777, %v1795
    %v1798 = vlaneseq
    %v1799 = vshrl.u32 %v1798, 7
    %v1800 = vsub.s32 5, %v1799
    %v1801 = vrot.slane %v1048, %v1800
    %v1803 = vsel %vm895, %v1796, 0
    %v1806 = vsel %vm895, %v1797, 0
    %v1809 = vsel %vm895, %v1043, 0
    %v1812 = vsel %vm895, %v1044, 0
    %v1815 = vsel %vm895, %v1045, 0
    %v1818 = vsel %vm895, %v1046, 0
    %1820 = vmatprep.subr.mxu0 0.0
    %1821 = vmatpush1.xpose.msra.mxu0 %v1809
    %1822 = vmatprep.subr.mxu0 0.0
    %1823 = vmatpush1.xpose.msra.mxu0 %v1812
    %1824 = vmatprep.subr.mxu0 0.0
    %1825 = vmatpush1.xpose.msra.mxu0 %v1815
    %1826 = vmatprep.subr.mxu0 0.0
    %1827 = vmatpush1.xpose.msra.mxu0 %v1818
    %1828 = vmatprep.subr.mxu0 0.0
    %1829 = vmatpush1.xpose.msra.mxu0 0.0
    %1830 = vmatprep.subr.mxu0 0.0
    %1831 = vmatpush1.xpose.msra.mxu0 0.0
    %1832 = vmatprep.subr.mxu0 0.0
    %1833 = vmatpush1.xpose.msra.mxu0 0.0
    %1834 = vmatprep.subr.mxu0 0.0
    %1835 = vmatpush1.xpose.msra.mxu0 0.0
    %1836 = vmatprep.subr.mxu0 0.0
    %1837 = vmatpush1.xpose.msra.mxu0 0.0
    %1838 = vmatprep.subr.mxu0 0.0
    %1839 = vmatpush1.xpose.msra.mxu0 0.0
    %1840 = vmatprep.subr.mxu0 0.0
    %1841 = vmatpush1.xpose.msra.mxu0 0.0
    %1842 = vmatprep.subr.mxu0 0.0
    %1843 = vmatpush1.xpose.msra.mxu0 0.0
    %1844 = vmatprep.subr.mxu0 0.0
    %1845 = vmatpush1.xpose.msra.mxu0 0.0
    %1846 = vmatprep.subr.mxu0 0.0
    %1847 = vmatpush1.xpose.msra.mxu0 0.0
    %1848 = vmatprep.subr.mxu0 0.0
    %1849 = vmatpush1.xpose.msra.mxu0 0.0
    %1850 = vmatprep.subr.mxu0 0.0
    %1851 = vmatpush1.xpose.msra.mxu0 0.0
    %1852 = vmatprep.subr.mxu0 0.0
    %1853 = vmatpush1.xpose.msra.mxu0 0.0
    %1854 = vmatprep.subr.mxu0 0.0
    %1855 = vmatpush1.xpose.msra.mxu0 0.0
    %1856 = vmatprep.subr.mxu0 0.0
    %1857 = vmatpush1.xpose.msra.mxu0 0.0
    %1858 = vmatprep.subr.mxu0 0.0
    %1859 = vmatpush1.xpose.msra.mxu0 0.0
    %1860 = vmatprep.subr.mxu0 0.0
    %1861 = vmatpush1.xpose.msra.mxu0 0.0
    %1862 = vmatprep.subr.mxu0 0.0
    %1863 = vmatpush1.xpose.msra.mxu0 0.0
    %1864 = vmatprep.subr.mxu0 0.0
    %1865 = vmatpush1.xpose.msra.mxu0 0.0
    %1866 = vmatprep.subr.mxu0 0.0
    %1867 = vmatpush1.xpose.msra.mxu0 0.0
    %1868 = vmatprep.subr.mxu0 0.0
    %1869 = vmatpush1.xpose.msra.mxu0 0.0
    %1870 = vmatprep.subr.mxu0 0.0
    %1871 = vmatpush1.xpose.msra.mxu0 0.0
    %1872 = vmatprep.subr.mxu0 0.0
    %1873 = vmatpush1.xpose.msra.mxu0 0.0
    %1874 = vmatprep.subr.mxu0 0.0
    %1875 = vmatpush1.xpose.msra.mxu0 0.0
    %1876 = vmatprep.subr.mxu0 0.0
    %1877 = vmatpush1.xpose.msra.mxu0 0.0
    %1878 = vmatprep.subr.mxu0 0.0
    %1879 = vmatpush1.xpose.msra.mxu0 0.0
    %1880 = vmatprep.subr.mxu0 0.0
    %1881 = vmatpush1.xpose.msra.mxu0 0.0
    %1882 = vmatprep.subr.mxu0 0.0
    %1883 = vmatpush1.xpose.msra.mxu0 0.0
    %1884 = vmatprep.mubr.f32.mxu0 0.0
    %1885 = vmatmul.mubr.f32.gmra.mrb[0].mxu0 %v1803
    %v1886 = vpop.f32.mrb[0].mxu0
    %v1887 = vadd.f32 %v1801, %v1886
    %v1888 = vpop.f32.mrb[0].mxu0
    %1889 = vmatprep.mubr.f32.mxu0 0.0
    %1890 = vmatmul.mubr.f32.gmra.mrb[0].mxu0 %v1806
    %v1891 = vpop.f32.mrb[0].mxu0
    %v1892 = vadd.f32 %v1801, %v1891
    %v1893 = vpop.f32.mrb[0].mxu0
    %1894 = vdwg.mxu0
    %v1895 = vadd.f32 %v1693, %v1887
    %v1896 = vadd.f32 %v1694, %v1892
    %v1897 = vsel %vm84, %v1895, 0.0
    %1898 = vadd.xlane.f32.xlu0 %v1897
    %v1899 = vpop.xlane.xlu0 %1898
    %v1900 = vsel %vm84, %v1896, 0.0
    %1901 = vadd.xlane.f32.xlu0 %v1900
    %v1902 = vpop.xlane.xlu0 %1901
    %v1903 = vmul.f32 %v1899, %v91
    %v1904 = vmul.f32 %v1902, %v91
    %v1905 = vmul.f32 %v1895, %v1895
    %v1906 = vmul.f32 %v1896, %v1896
    %v1907 = vsel %vm84, %v1905, 0.0
    %1908 = vadd.xlane.f32.xlu0 %v1907
    %v1909 = vpop.xlane.xlu0 %1908
    %v1910 = vsel %vm84, %v1906, 0.0
    %1911 = vadd.xlane.f32.xlu0 %v1910
    %v1912 = vpop.xlane.xlu0 %1911
    %v1913 = vmul.f32 %v1909, %v91
    %v1914 = vmul.f32 %v1912, %v91
    %v1915 = vsub.f32 %v1895, %v1903
    %v1916 = vsub.f32 %v1896, %v1904
    %v1917 = vmul.f32 %v1903, %v1903
    %v1918 = vmul.f32 %v1904, %v1904
    %v1919 = vsub.f32 %v1913, %v1917
    %v1920 = vsub.f32 %v1914, %v1918
    %v1921 = vadd.f32 %v1919, 1e-12
    %v1922 = vadd.f32 %v1920, 1e-12
    %v1923 = vrsqrt.pop %v1921
    %v1924 = vrsqrt.pop %v1922
    %v1925 = vmul.f32 %v1915, %v1923
    %v1926 = vmul.f32 %v1916, %v1924
    %v1927 = vlaneseq
    %v1928 = vshrl.u32 %v1927, 7
    %v1929 = vsub.s32 6, %v1928
    %v1930 = vrot.slane %v1048, %v1929
    %v1931 = vmul.f32 %v1925, %v1930
    %v1932 = vmul.f32 %v1926, %v1930
    %v1933 = vlaneseq
    %v1934 = vshrl.u32 %v1933, 7
    %v1935 = vsub.s32 7, %v1934
    %v1936 = vrot.slane %v1048, %v1935
    %v1937 = vadd.f32 %v1931, %v1936
    %v1938 = vadd.f32 %v1932, %v1936
    %v1939 = vsel %vm84, %v1937, 0.0
    %v1940 = vrot.slane %v1939, 4
    %v1941 = vadd.f32 %v1939, %v1940
    %v1942 = vrot.slane %v1941, 2
    %v1943 = vadd.f32 %v1941, %v1942
    %v1944 = vrot.slane %v1943, 1
    %v1945 = vadd.f32 %v1943, %v1944
    %v1946 = vsel %vm84, %v1938, 0.0
    %v1947 = vrot.slane %v1946, 4
    %v1948 = vadd.f32 %v1946, %v1947
    %v1949 = vrot.slane %v1948, 2
    %v1950 = vadd.f32 %v1948, %v1949
    %v1951 = vrot.slane %v1950, 1
    %v1952 = vadd.f32 %v1950, %v1951
    %vm1953 = vcmask 1040384
    %v1954 = vsel %vm1953, %v1945, %v1952
    %v1955 = vmul.f32 %v1954, 0.125
    %vm1956 = vcmask 254976
    %1957 = vst.msk [vmem:[#allocation10] sm:$0x3] %vm1956, %v1955
    // Predicated region
    $region42: #{tpu_custom_call.1} parent=1 // pred_check
      _
    $region43: #{tpu_custom_call.1} parent=1 // pred_check_branch
      %1959 = sbr.rel (0) target = $region45
    $region44: #{tpu_custom_call.1} parent=1 // pred_region
      %s1961 = ssub.s32 32, 32
      %1962 = vsyncadd [#allocation4], %s1961
      %s1964 = sshll.u32 [#allocation10], 4
      %s1965 = int_to_ptr.vmem [resolvable:$true] %s1964
      %1967 = dma.vmem_to_hbm [thread:$0]  %s1965, 32, %s6, [#allocation4]
    $region45: #{tpu_custom_call.1} parent=1 // pred_fallthru
      _
    // Predicated region
    $region46: #{tpu_custom_call.1} parent=1 // pred_check
      _
    $region47: #{tpu_custom_call.1} parent=1 // pred_check_branch
      %1969 = sbr.rel (0) target = $region49
    $region48: #{tpu_custom_call.1} parent=1 // pred_region
      %1970 = dma.done [#allocation4], 32
    $region49: #{tpu_custom_call.1} parent=1 // pred_fallthru
      _
    %1971 = vsyncpa [#allocation3], 1
    %1972 = vsyncpa [#allocation6], 1
    %1973 = vsyncpa [#allocation9], 1
    %1974 = vsyncpa [#allocation4], 1

</llo_original>
